<compile_context>
chip_gen: v7x
topology: tpu7x:2x2x1
jax: 0.10.0
libtpu: 0.0.40
codegen_flags: <defaults>
</compile_context>

<pallas_src>
import functools

import jax
import jax.numpy as jnp
from jax.experimental import pallas as pl
from jax.experimental.pallas import tpu as pltpu


# ----------------------------------------------------------------------------
# Model constants (synthetic encoder / classifier, deterministic)
# ----------------------------------------------------------------------------

IN_CH = 3            # input image channels
HID_CH = 32          # encoder output feature dim (= encoder.out_dim)
N_CLASSES = 10       # classifier output dim
SIDEOUT_INFO = [("conv1", HID_CH)]
TEMP = 1.0
METHOD = "sqr"

K_RAW = 9 * IN_CH    # 3x3 conv contraction dim = 27
K_PAD = 32           # padded contraction dim (sublane friendly)
OUT_PAD = 128        # lane-dense classifier output slab (cls | side | zeros)
LOGIT_PAD = 128      # lane-dense meta-logit slab (n_way | zeros)
G_BATCH = 8          # images per grid step (multiple of 8 -> unmasked stores)
# TODO(synk): re-derive G_BATCH for v7x's 64 MiB VMEM if H/W grow (per-step
# bytes = 2 * G*HW*K_PAD*2 (bf16, double-buffered) + G*HW*HID*4 live f32).


def _round_up(n, m):
    return ((n + m - 1) // m) * m


# ----------------------------------------------------------------------------
# Pallas kernels
# ----------------------------------------------------------------------------

def _encode_and_pool(patches, w1, b1, g):
    """Shared conv-matmul + bias + ReLU + per-image global-average-pool.

    patches:(g*hw, K_PAD) bf16, w1:(K_PAD, HID) bf16, b1:(1, HID) f32.
    Pool is a sublane reduction (XLU), not an M=1 MXU matmul.
    """
    feat = jnp.dot(patches, w1, preferred_element_type=jnp.float32)   # (g*hw, HID)
    feat = jnp.maximum(feat + b1, 0.0)
    hid = feat.shape[1]
    hw = feat.shape[0] // g
    pooled = jnp.sum(feat.reshape(g, hw, hid), axis=1) * (1.0 / hw)   # (g, HID)
    return pooled


def _fused_class_kernel(patches_ref, w1_ref, b1_ref, w2_ref, b2_ref, o_ref):
    """G images per grid step: encoder + pool + merged (main|side) classifier.

    o:(G, OUT_PAD) lane-dense (full unmasked vreg stores)."""
    g = o_ref.shape[0]
    pooled = _encode_and_pool(patches_ref[...], w1_ref[...], b1_ref[...], g)
    out = jnp.dot(pooled, w2_ref[...],
                  preferred_element_type=jnp.float32) + b2_ref[...]   # (G, OUT_PAD)
    o_ref[...] = out.astype(o_ref.dtype)


def _encode_pool_kernel(patches_ref, w1_ref, b1_ref, o_ref):
    """G images per grid step: encoder + pool only (meta path). o:(G, HID)."""
    g = o_ref.shape[0]
    pooled = _encode_and_pool(patches_ref[...], w1_ref[...], b1_ref[...], g)
    o_ref[...] = pooled.astype(o_ref.dtype)


def _meta_logits_kernel(pooled_ref, apad_ref, temp_ref, o_ref, *, ns_tot):
    """Prototype averaging + 'sqr' logits.

    pooled:(NTOT_pad, HID) f32, apad:(LOGIT_PAD, NTOT_pad) f32,
    temp:(1,1) SMEM, o:(NQ, LOGIT_PAD) with logits in the first n_way lanes.
    """
    nq = o_ref.shape[0]
    pooled = pooled_ref[...]                                          # (NTOT_pad, HID)
    proto = jnp.dot(apad_ref[...], pooled,
                    preferred_element_type=jnp.float32)               # (LOGIT_PAD, HID)
    # queries are the last nq real rows -> static sublane slice (no selector matmul)
    query = pooled[ns_tot:ns_tot + nq, :]                             # (NQ, HID)
    qq = jnp.sum(query * query, axis=-1, keepdims=True)               # (NQ, 1)
    # proto-row squared norms directly as a (1, LOGIT_PAD) row via an MXU
    # contraction -- avoids an explicit XLU transpose of (LOGIT_PAD, 1).
    pp = jax.lax.dot_general(jnp.ones((1, proto.shape[1]), jnp.float32),
                             proto * proto,
                             (((1,), (1,)), ((), ())),
                             preferred_element_type=jnp.float32)      # (1, LOGIT_PAD)
    # RHS-transposed contraction consumed natively by the MXU (no proto.T).
    qp = jax.lax.dot_general(query, proto,
                             (((1,), (1,)), ((), ())),
                             preferred_element_type=jnp.float32)      # (NQ, LOGIT_PAD)
    # TODO(synk): qq + pp - 2qp loses precision when query ~= prototype; switch
    # to a direct per-way (q - p)^2 subtract-square-sum if exact parity with the
    # torch reference matters.
    dist = jnp.maximum(qq + pp - 2.0 * qp, 0.0)
    o_ref[...] = (-dist * temp_ref[0, 0]).astype(o_ref.dtype)


# ----------------------------------------------------------------------------
# pallas_call wrappers
# ----------------------------------------------------------------------------

def fused_class_pallas(patches, w1, b1, w2, b2, n_pad, hw, g):
    return pl.pallas_call(
        _fused_class_kernel,
        out_shape=jax.ShapeDtypeStruct((n_pad, OUT_PAD), jnp.float32),
        grid=(n_pad // g,),
        in_specs=[
            pl.BlockSpec((g * hw, K_PAD), lambda i: (i, 0)),
            pl.BlockSpec(w1.shape, lambda i: (0, 0)),
            pl.BlockSpec(b1.shape, lambda i: (0, 0)),
            pl.BlockSpec(w2.shape, lambda i: (0, 0)),
            pl.BlockSpec(b2.shape, lambda i: (0, 0)),
        ],
        out_specs=pl.BlockSpec((g, OUT_PAD), lambda i: (i, 0)),
        compiler_params=pltpu.CompilerParams(
            dimension_semantics=("parallel",)),
    )(patches, w1, b1, w2, b2)


def encode_pool_pallas(patches, w1, b1, n_pad, hw, g):
    return pl.pallas_call(
        _encode_pool_kernel,
        out_shape=jax.ShapeDtypeStruct((n_pad, HID_CH), jnp.float32),
        grid=(n_pad // g,),
        in_specs=[
            pl.BlockSpec((g * hw, K_PAD), lambda i: (i, 0)),
            pl.BlockSpec(w1.shape, lambda i: (0, 0)),
            pl.BlockSpec(b1.shape, lambda i: (0, 0)),
        ],
        out_specs=pl.BlockSpec((g, HID_CH), lambda i: (i, 0)),
        compiler_params=pltpu.CompilerParams(
            dimension_semantics=("parallel",)),
    )(patches, w1, b1)


def meta_logits_pallas(pooled, apad, temp, ns_tot, nq):
    kernel = functools.partial(_meta_logits_kernel, ns_tot=ns_tot)
    return pl.pallas_call(
        kernel,
        out_shape=jax.ShapeDtypeStruct((nq, LOGIT_PAD), jnp.float32),
        in_specs=[
            pl.BlockSpec(memory_space=pltpu.MemorySpace.VMEM),
            pl.BlockSpec(memory_space=pltpu.MemorySpace.VMEM),
            pl.BlockSpec(memory_space=pltpu.MemorySpace.SMEM),
        ],
        out_specs=pl.BlockSpec(memory_space=pltpu.MemorySpace.VMEM),
    )(pooled, apad, temp)


# ----------------------------------------------------------------------------
# Parameters
# ----------------------------------------------------------------------------

def make_params(key):
    k = jax.random.split(key, 6)
    return {
        # encoder: single 3x3 conv (stride 1, pad 1) + ReLU, torch layout (O, C, kh, kw)
        "conv_w": 0.05 * jax.random.normal(k[0], (HID_CH, IN_CH, 3, 3), jnp.float32),
        "conv_b": 0.01 * jax.random.normal(k[1], (HID_CH,), jnp.float32),
        # main classifier (HID_CH -> N_CLASSES)
        "cls_w": 0.05 * jax.random.normal(k[2], (HID_CH, N_CLASSES), jnp.float32),
        "cls_b": jnp.zeros((N_CLASSES,), jnp.float32),
        # sideout classifier (sideout_dim -> N_CLASSES)
        "side_w": 0.05 * jax.random.normal(k[3], (HID_CH, N_CLASSES), jnp.float32),
        "side_b": jnp.zeros((N_CLASSES,), jnp.float32),
        # learnable temperature
        "temp": jnp.asarray(TEMP, jnp.float32),
    }


# ----------------------------------------------------------------------------
# JAX glue (weight packing + im2col); hot path runs in the fused kernels
# ----------------------------------------------------------------------------

def _im2col_3x3_padded(x_nhwc):
    """3x3 same-padding patch extraction, (kh,kw,c) ordering, K padded 27->32.

    Cast to bf16: the patch slab is the dominant HBM traffic and bf16 x bf16
    -> f32 is native on the MXU of v5e/v6e/v7x."""
    N, H, W, C = x_nhwc.shape
    xp = jnp.pad(x_nhwc, ((0, 0), (1, 1), (1, 1), (0, 0)))
    cols = [xp[:, dh:dh + H, dw:dw + W, :] for dh in range(3) for dw in range(3)]
    patches = jnp.concatenate(cols, axis=-1).reshape(N * H * W, 9 * C)
    patches = jnp.pad(patches, ((0, 0), (0, K_PAD - 9 * C)))
    return patches.astype(jnp.bfloat16)


def _conv_mats(params):
    # torch conv weight (O, C, kh, kw) -> matmul weight (kh*kw*C, O), K padded
    w = jnp.transpose(params["conv_w"], (2, 3, 1, 0)).reshape(K_RAW, HID_CH)
    w = jnp.pad(w, ((0, K_PAD - K_RAW), (0, 0))).astype(jnp.bfloat16)
    b = params["conv_b"].reshape(1, HID_CH).astype(jnp.float32)
    return w, b


def _cls_mats(params):
    # merge main + sideout classifiers into one lane-dense (HID, OUT_PAD) matmul
    w = jnp.concatenate([params["cls_w"], params["side_w"]], axis=1)     # (HID, 2C)
    b = jnp.concatenate([params["cls_b"], params["side_b"]])[None, :]    # (1, 2C)
    w = jnp.pad(w, ((0, 0), (0, OUT_PAD - 2 * N_CLASSES)))
    b = jnp.pad(b, ((0, 0), (0, OUT_PAD - 2 * N_CLASSES)))
    return w, b


def class_forward(params, x_nchw):
    """mode='class': returns (out_x, out_s). Single fused, gridded pallas_call."""
    x_nhwc = jnp.transpose(x_nchw, (0, 2, 3, 1))
    N, H, W, _ = x_nhwc.shape
    hw = H * W
    assert hw % 8 == 0, "H*W must be a multiple of 8 for the in-kernel pool reshape"

    patches = _im2col_3x3_padded(x_nhwc)                         # (N*HW, K_PAD) bf16
    w1, b1 = _conv_mats(params)
    w2, b2 = _cls_mats(params)

    n_pad = _round_up(N, G_BATCH)
    patches = jnp.pad(patches, ((0, (n_pad - N) * hw), (0, 0)))
    out = fused_class_pallas(patches, w1, b1, w2, b2, n_pad, hw, G_BATCH)  # (n_pad, OUT_PAD)

    out_x = out[:N, :N_CLASSES]
    # sideout 'conv1' pools the same feature map the encoder already pooled,
    # so its classifier shares the fused matmul (columns N_CLASSES:2*N_CLASSES).
    out_s = {SIDEOUT_INFO[0][0]: out[:N, N_CLASSES:2 * N_CLASSES]}
    return out_x, out_s


def meta_forward(params, x_shot, x_query):
    """mode='meta', method='sqr': returns logits of shape query_shape + (n_way,)."""
    shot_shape = x_shot.shape[:-3]
    assert len(shot_shape) == 2, "expected x_shot of shape (n_way, n_shot, C, H, W)"
    n_way, n_shot = shot_shape
    query_shape = x_query.shape[:-3]
    img_shape = x_shot.shape[-3:]

    xs = x_shot.reshape((-1,) + img_shape)
    xq = x_query.reshape((-1,) + img_shape)
    ns_tot, nq = xs.shape[0], xq.shape[0]
    ntot = ns_tot + nq

    x_tot = jnp.concatenate([xs, xq], axis=0)                    # (NTOT, C, H, W)
    x_nhwc = jnp.transpose(x_tot, (0, 2, 3, 1))
    H, W = x_nhwc.shape[1], x_nhwc.shape[2]
    hw = H * W
    assert hw % 8 == 0, "H*W must be a multiple of 8 for the in-kernel pool reshape"

    patches = _im2col_3x3_padded(x_nhwc)                         # (NTOT*HW, K_PAD) bf16
    w1, b1 = _conv_mats(params)

    ntot_pad = _round_up(ntot, G_BATCH)
    patches = jnp.pad(patches, ((0, (ntot_pad - ntot) * hw), (0, 0)))

    # gridded, parallel encoder + pool (bounds VMEM, uses both v7x TCs)
    pooled = encode_pool_pallas(patches, w1, b1, ntot_pad, hw, G_BATCH)  # (ntot_pad, HID)

    # prototype averaging over shots, zero-padded to LOGIT_PAD rows / ntot_pad cols
    a = jnp.kron(jnp.eye(n_way, dtype=jnp.float32),
                 jnp.full((1, n_shot), 1.0 / n_shot, jnp.float32))       # (n_way, ns_tot)
    apad = jnp.pad(a, ((0, LOGIT_PAD - n_way), (0, ntot_pad - ns_tot)))

    # temp / 1600.0 mirrors the torch reference for method='sqr'.
    # TODO(synk): 1600 was the Conv-4 flattened feature dim in the reference;
    # confirm the constant vs. HID_CH if the encoder changes.
    temp = jnp.reshape(params["temp"] / 1600.0, (1, 1)).astype(jnp.float32)

    logits_pad = meta_logits_pallas(pooled, apad, temp, ns_tot, nq)      # (nq, LOGIT_PAD)
    logits = logits_pad[:, :n_way]
    return logits.reshape(query_shape + (n_way,))


# ----------------------------------------------------------------------------
# Main
# ----------------------------------------------------------------------------

if __name__ == "__main__":
    key = jax.random.PRNGKey(0)
    pkey, k1, k2, k3 = jax.random.split(key, 4)
    params = make_params(pkey)

    class_fwd = jax.jit(class_forward)
    meta_fwd = jax.jit(meta_forward)

    # mode='class': standard NCHW image batch
    x = jax.random.normal(k1, (2, IN_CH, 16, 16), jnp.float32)
    out_x, out_s = class_fwd(params, x)
    jax.block_until_ready(out_x)
    jax.block_until_ready(out_s["conv1"])
    assert out_x.shape == (2, N_CLASSES)
    assert out_s["conv1"].shape == (2, N_CLASSES)

    # mode='meta': x_shot (n_way, n_shot, C, H, W), x_query (n_query, C, H, W)
    x_shot = jax.random.normal(k2, (2, 3, IN_CH, 16, 16), jnp.float32)
    x_query = jax.random.normal(k3, (4, IN_CH, 16, 16), jnp.float32)
    logits = meta_fwd(params, x_shot, x_query)
    jax.block_until_ready(logits)
    assert logits.shape == (4, 2)

    print("KERNEL_OK")
</pallas_src>

<mosaic_0001>
module attributes {stable_mosaic.version = 11 : i64} {
  func.func @_fused_class_kernel(%arg0: i32, %arg1: memref<2048x32xbf16, #tpu.memory_space<vmem>>, %arg2: memref<32x32xbf16, #tpu.memory_space<vmem>>, %arg3: memref<1x32xf32, #tpu.memory_space<vmem>>, %arg4: memref<32x128xf32, #tpu.memory_space<vmem>>, %arg5: memref<1x128xf32, #tpu.memory_space<vmem>>, %arg6: memref<8x128xf32, #tpu.memory_space<vmem>>) attributes {dimension_semantics = [#tpu.dimension_semantics<parallel>], iteration_bounds = array<i64: 1>, scalar_prefetch = 0 : i64, scratch_operands = 0 : i64, tpu.core_type = #tpu.core_type<tc>, window_params = [{transform_indices = @transform_0, window_bounds = array<i64: 2048, 32>}, {pipeline_mode = #tpu.pipeline_mode<synchronous>, transform_indices = @transform_1, window_bounds = array<i64: 32, 32>}, {pipeline_mode = #tpu.pipeline_mode<synchronous>, transform_indices = @transform_2, window_bounds = array<i64: 1, 32>}, {pipeline_mode = #tpu.pipeline_mode<synchronous>, transform_indices = @transform_3, window_bounds = array<i64: 32, 128>}, {pipeline_mode = #tpu.pipeline_mode<synchronous>, transform_indices = @transform_4, window_bounds = array<i64: 1, 128>}, {transform_indices = @transform_5, window_bounds = array<i64: 8, 128>}]} {
    %c0 = arith.constant 0 : index
    %c0_0 = arith.constant 0 : index
    %0 = vector.load %arg1[%c0, %c0_0] : memref<2048x32xbf16, #tpu.memory_space<vmem>>, vector<2048x32xbf16>
    %c0_1 = arith.constant 0 : index
    %c0_2 = arith.constant 0 : index
    %1 = vector.load %arg2[%c0_1, %c0_2] : memref<32x32xbf16, #tpu.memory_space<vmem>>, vector<32x32xbf16>
    %c0_3 = arith.constant 0 : index
    %c0_4 = arith.constant 0 : index
    %2 = vector.load %arg3[%c0_3, %c0_4] : memref<1x32xf32, #tpu.memory_space<vmem>>, vector<1x32xf32>
    %cst = arith.constant dense<0.000000e+00> : vector<2048x32xf32>
    %3 = tpu.matmul %0, %1, %cst {dimension_numbers = #tpu.dot_dimension_numbers<[1], [0], [0], [1], [0, 0, 1, 1], [], []>} : vector<2048x32xbf16>, vector<32x32xbf16>, vector<2048x32xf32> -> vector<2048x32xf32>
    %4 = vector.broadcast %2 : vector<1x32xf32> to vector<2048x32xf32>
    %5 = arith.addf %3, %4 : vector<2048x32xf32>
    %cst_5 = arith.constant 0.000000e+00 : f32
    %6 = vector.broadcast %cst_5 : f32 to vector<2048x32xf32>
    %7 = arith.maximumf %5, %6 : vector<2048x32xf32>
    %8 = vector.shape_cast %7 : vector<2048x32xf32> to vector<8x256x32xf32>
    %cst_6 = arith.constant dense<0.000000e+00> : vector<8x32xf32>
    %9 = vector.multi_reduction <add>, %8, %cst_6 [1] : vector<8x256x32xf32> to vector<8x32xf32>
    %cst_7 = arith.constant 3.906250e-03 : f32
    %10 = vector.broadcast %cst_7 : f32 to vector<8x32xf32>
    %11 = arith.mulf %9, %10 : vector<8x32xf32>
    %c0_8 = arith.constant 0 : index
    %c0_9 = arith.constant 0 : index
    %12 = vector.load %arg4[%c0_8, %c0_9] : memref<32x128xf32, #tpu.memory_space<vmem>>, vector<32x128xf32>
    %cst_10 = arith.constant dense<0.000000e+00> : vector<8x128xf32>
    %13 = tpu.matmul %11, %12, %cst_10 {dimension_numbers = #tpu.dot_dimension_numbers<[1], [0], [0], [1], [0, 0, 1, 1], [], []>} : vector<8x32xf32>, vector<32x128xf32>, vector<8x128xf32> -> vector<8x128xf32>
    %c0_11 = arith.constant 0 : index
    %c0_12 = arith.constant 0 : index
    %14 = vector.load %arg5[%c0_11, %c0_12] : memref<1x128xf32, #tpu.memory_space<vmem>>, vector<1x128xf32>
    %15 = vector.broadcast %14 : vector<1x128xf32> to vector<8x128xf32>
    %16 = arith.addf %13, %15 : vector<8x128xf32>
    %c0_13 = arith.constant 0 : index
    %c0_14 = arith.constant 0 : index
    %17 = vector.load %arg6[%c0_13, %c0_14] : memref<8x128xf32, #tpu.memory_space<vmem>>, vector<8x128xf32>
    tpu.vector_store %arg6[%c0_13, %c0_14], %16 {strides = array<i32>} : memref<8x128xf32, #tpu.memory_space<vmem>>, vector<8x128xf32>,
    return
  }
  func.func @transform_0(%arg0: i32) -> (i32, i32) {
    %c0_i32 = arith.constant 0 : i32
    %c0_i32_0 = arith.constant 0 : i32
    return %arg0, %c0_i32 : i32, i32
  }
  func.func @transform_1(%arg0: i32) -> (i32, i32) {
    %c0_i32 = arith.constant 0 : i32
    %c0_i32_0 = arith.constant 0 : i32
    %c0_i32_1 = arith.constant 0 : i32
    return %c0_i32, %c0_i32_0 : i32, i32
  }
  func.func @transform_2(%arg0: i32) -> (i32, i32) {
    %c0_i32 = arith.constant 0 : i32
    %c0_i32_0 = arith.constant 0 : i32
    %c0_i32_1 = arith.constant 0 : i32
    return %c0_i32, %c0_i32_0 : i32, i32
  }
  func.func @transform_3(%arg0: i32) -> (i32, i32) {
    %c0_i32 = arith.constant 0 : i32
    %c0_i32_0 = arith.constant 0 : i32
    %c0_i32_1 = arith.constant 0 : i32
    return %c0_i32, %c0_i32_0 : i32, i32
  }
  func.func @transform_4(%arg0: i32) -> (i32, i32) {
    %c0_i32 = arith.constant 0 : i32
    %c0_i32_0 = arith.constant 0 : i32
    %c0_i32_1 = arith.constant 0 : i32
    return %c0_i32, %c0_i32_0 : i32, i32
  }
  func.func @transform_5(%arg0: i32) -> (i32, i32) {
    %c0_i32 = arith.constant 0 : i32
    %c0_i32_0 = arith.constant 0 : i32
    return %arg0, %c0_i32 : i32, i32
  }
}

</mosaic_0001>

<llo_original>
// kernel: class_forward.1
$region0: #{class_forward.1}
  #allocation0 [shape = 'u32[]', space=smem, size = 0x4, offset = 0x4, fixed_abs, tag = 'smem constant byte address 0x4 - core index']
  #allocation1 [shape = 'u32[144,128]{1,0:T(1,128)}', space=vmem, size = 0x12000, scoped, tag = 'internal scratch']
  %s0 = inlined_call_operand.vmem [shape: bf16[2048,32], index: 0, kind: input, shape index: {}]
  %s1 = inlined_call_operand.vmem [shape: bf16[32,32], index: 1, kind: input, shape index: {}]
  %s2 = inlined_call_operand.vmem [shape: f32[1,32], index: 2, kind: input, shape index: {}]
  %s3 = inlined_call_operand.vmem [shape: f32[32,128], index: 3, kind: input, shape index: {}]
  %s4 = inlined_call_operand.vmem [shape: f32[1,128], index: 4, kind: input, shape index: {}]
  %s5 = inlined_call_operand.vmem [shape: f32[8,128], index: 5, kind: output, shape index: {}]
  %s6 = sld [smem:[#allocation0]]
  $region30: #{class_forward.1} parent=0
    _
  %s8 = ssub.s32 1, %s6
  %s9 = scalar_select 0, %s8, %s6
  // Predicated region
  $region2: #{class_forward.1} parent=0 // pred_check
    _
  $region3: #{class_forward.1} parent=0 // pred_check_branch
    %11 = sbr.rel (0) target = $region5
  $region4: #{class_forward.1} parent=0 // pred_region
    _
  $region5: #{class_forward.1} parent=0 // pred_fallthru
    _
  // Predicated region
  $region6: #{class_forward.1} parent=0 // pred_check
    _
  $region7: #{class_forward.1} parent=0 // pred_check_branch
    %13 = sbr.rel (0) target = $region9
  $region8: #{class_forward.1} parent=0 // pred_region
    _
  $region9: #{class_forward.1} parent=0 // pred_fallthru
    _
  // Predicated region
  $region10: #{class_forward.1} parent=0 // pred_check
    _
  $region11: #{class_forward.1} parent=0 // pred_check_branch
    %15 = sbr.rel (0) target = $region13
  $region12: #{class_forward.1} parent=0 // pred_region
    _
  $region13: #{class_forward.1} parent=0 // pred_fallthru
    _
  // Predicated region
  $region14: #{class_forward.1} parent=0 // pred_check
    _
  $region15: #{class_forward.1} parent=0 // pred_check_branch
    %17 = sbr.rel (0) target = $region17
  $region16: #{class_forward.1} parent=0 // pred_region
    _
  $region17: #{class_forward.1} parent=0 // pred_fallthru
    _
  // Predicated region
  $region18: #{class_forward.1} parent=0 // pred_check
    _
  $region19: #{class_forward.1} parent=0 // pred_check_branch
    %19 = sbr.rel (0) target = $region21
  $region20: #{class_forward.1} parent=0 // pred_region
    _
  $region21: #{class_forward.1} parent=0 // pred_fallthru
    _
  %v21 = vld [vmem:[%s0] sm:$0xf]
  %v22 = vld [vmem:[%s0 + $0x4] sm:$0xf]
  %v23 = vld [vmem:[%s0 + $0x8] sm:$0xf]
  %v24 = vld [vmem:[%s0 + $0xc] sm:$0xf]
  %v25 = vld [vmem:[%s0 + $0x10] sm:$0xf]
  %v26 = vld [vmem:[%s0 + $0x14] sm:$0xf]
  %v27 = vld [vmem:[%s0 + $0x18] sm:$0xf]
  %v28 = vld [vmem:[%s0 + $0x1c] sm:$0xf]
  %v29 = vld [vmem:[%s0 + $0x20] sm:$0xf]
  %v30 = vld [vmem:[%s0 + $0x24] sm:$0xf]
  %v31 = vld [vmem:[%s0 + $0x28] sm:$0xf]
  %v32 = vld [vmem:[%s0 + $0x2c] sm:$0xf]
  %v33 = vld [vmem:[%s0 + $0x30] sm:$0xf]
  %v34 = vld [vmem:[%s0 + $0x34] sm:$0xf]
  %v35 = vld [vmem:[%s0 + $0x38] sm:$0xf]
  %v36 = vld [vmem:[%s0 + $0x3c] sm:$0xf]
  %v37 = vld [vmem:[%s0 + $0x40] sm:$0xf]
  %v38 = vld [vmem:[%s0 + $0x44] sm:$0xf]
  %v39 = vld [vmem:[%s0 + $0x48] sm:$0xf]
  %v40 = vld [vmem:[%s0 + $0x4c] sm:$0xf]
  %v41 = vld [vmem:[%s0 + $0x50] sm:$0xf]
  %v42 = vld [vmem:[%s0 + $0x54] sm:$0xf]
  %v43 = vld [vmem:[%s0 + $0x58] sm:$0xf]
  %v44 = vld [vmem:[%s0 + $0x5c] sm:$0xf]
  %v45 = vld [vmem:[%s0 + $0x60] sm:$0xf]
  %v46 = vld [vmem:[%s0 + $0x64] sm:$0xf]
  %v47 = vld [vmem:[%s0 + $0x68] sm:$0xf]
  %v48 = vld [vmem:[%s0 + $0x6c] sm:$0xf]
  %v49 = vld [vmem:[%s0 + $0x70] sm:$0xf]
  %v50 = vld [vmem:[%s0 + $0x74] sm:$0xf]
  %v51 = vld [vmem:[%s0 + $0x78] sm:$0xf]
  %v52 = vld [vmem:[%s0 + $0x7c] sm:$0xf]
  %v53 = vld [vmem:[%s0 + $0x80] sm:$0xf]
  %v54 = vld [vmem:[%s0 + $0x84] sm:$0xf]
  %v55 = vld [vmem:[%s0 + $0x88] sm:$0xf]
  %v56 = vld [vmem:[%s0 + $0x8c] sm:$0xf]
  %v57 = vld [vmem:[%s0 + $0x90] sm:$0xf]
  %v58 = vld [vmem:[%s0 + $0x94] sm:$0xf]
  %v59 = vld [vmem:[%s0 + $0x98] sm:$0xf]
  %v60 = vld [vmem:[%s0 + $0x9c] sm:$0xf]
  %v61 = vld [vmem:[%s0 + $0xa0] sm:$0xf]
  %v62 = vld [vmem:[%s0 + $0xa4] sm:$0xf]
  %v63 = vld [vmem:[%s0 + $0xa8] sm:$0xf]
  %v64 = vld [vmem:[%s0 + $0xac] sm:$0xf]
  %v65 = vld [vmem:[%s0 + $0xb0] sm:$0xf]
  %v66 = vld [vmem:[%s0 + $0xb4] sm:$0xf]
  %v67 = vld [vmem:[%s0 + $0xb8] sm:$0xf]
  %v68 = vld [vmem:[%s0 + $0xbc] sm:$0xf]
  %v69 = vld [vmem:[%s0 + $0xc0] sm:$0xf]
  %v70 = vld [vmem:[%s0 + $0xc4] sm:$0xf]
  %v71 = vld [vmem:[%s0 + $0xc8] sm:$0xf]
  %v72 = vld [vmem:[%s0 + $0xcc] sm:$0xf]
  %v73 = vld [vmem:[%s0 + $0xd0] sm:$0xf]
  %v74 = vld [vmem:[%s0 + $0xd4] sm:$0xf]
  %v75 = vld [vmem:[%s0 + $0xd8] sm:$0xf]
  %v76 = vld [vmem:[%s0 + $0xdc] sm:$0xf]
  %v77 = vld [vmem:[%s0 + $0xe0] sm:$0xf]
  %v78 = vld [vmem:[%s0 + $0xe4] sm:$0xf]
  %v79 = vld [vmem:[%s0 + $0xe8] sm:$0xf]
  %v80 = vld [vmem:[%s0 + $0xec] sm:$0xf]
  %v81 = vld [vmem:[%s0 + $0xf0] sm:$0xf]
  %v82 = vld [vmem:[%s0 + $0xf4] sm:$0xf]
  %v83 = vld [vmem:[%s0 + $0xf8] sm:$0xf]
  %v84 = vld [vmem:[%s0 + $0xfc] sm:$0xf]
  %v85 = vld [vmem:[%s0 + $0x100] sm:$0xf]
  %v86 = vld [vmem:[%s0 + $0x104] sm:$0xf]
  %v87 = vld [vmem:[%s0 + $0x108] sm:$0xf]
  %v88 = vld [vmem:[%s0 + $0x10c] sm:$0xf]
  %v89 = vld [vmem:[%s0 + $0x110] sm:$0xf]
  %v90 = vld [vmem:[%s0 + $0x114] sm:$0xf]
  %v91 = vld [vmem:[%s0 + $0x118] sm:$0xf]
  %v92 = vld [vmem:[%s0 + $0x11c] sm:$0xf]
  %v93 = vld [vmem:[%s0 + $0x120] sm:$0xf]
  %v94 = vld [vmem:[%s0 + $0x124] sm:$0xf]
  %v95 = vld [vmem:[%s0 + $0x128] sm:$0xf]
  %v96 = vld [vmem:[%s0 + $0x12c] sm:$0xf]
  %v97 = vld [vmem:[%s0 + $0x130] sm:$0xf]
  %v98 = vld [vmem:[%s0 + $0x134] sm:$0xf]
  %v99 = vld [vmem:[%s0 + $0x138] sm:$0xf]
  %v100 = vld [vmem:[%s0 + $0x13c] sm:$0xf]
  %v101 = vld [vmem:[%s0 + $0x140] sm:$0xf]
  %v102 = vld [vmem:[%s0 + $0x144] sm:$0xf]
  %v103 = vld [vmem:[%s0 + $0x148] sm:$0xf]
  %v104 = vld [vmem:[%s0 + $0x14c] sm:$0xf]
  %v105 = vld [vmem:[%s0 + $0x150] sm:$0xf]
  %v106 = vld [vmem:[%s0 + $0x154] sm:$0xf]
  %v107 = vld [vmem:[%s0 + $0x158] sm:$0xf]
  %v108 = vld [vmem:[%s0 + $0x15c] sm:$0xf]
  %v109 = vld [vmem:[%s0 + $0x160] sm:$0xf]
  %v110 = vld [vmem:[%s0 + $0x164] sm:$0xf]
  %v111 = vld [vmem:[%s0 + $0x168] sm:$0xf]
  %v112 = vld [vmem:[%s0 + $0x16c] sm:$0xf]
  %v113 = vld [vmem:[%s0 + $0x170] sm:$0xf]
  %v114 = vld [vmem:[%s0 + $0x174] sm:$0xf]
  %v115 = vld [vmem:[%s0 + $0x178] sm:$0xf]
  %v116 = vld [vmem:[%s0 + $0x17c] sm:$0xf]
  %v117 = vld [vmem:[%s0 + $0x180] sm:$0xf]
  %v118 = vld [vmem:[%s0 + $0x184] sm:$0xf]
  %v119 = vld [vmem:[%s0 + $0x188] sm:$0xf]
  %v120 = vld [vmem:[%s0 + $0x18c] sm:$0xf]
  %v121 = vld [vmem:[%s0 + $0x190] sm:$0xf]
  %v122 = vld [vmem:[%s0 + $0x194] sm:$0xf]
  %v123 = vld [vmem:[%s0 + $0x198] sm:$0xf]
  %v124 = vld [vmem:[%s0 + $0x19c] sm:$0xf]
  %v125 = vld [vmem:[%s0 + $0x1a0] sm:$0xf]
  %v126 = vld [vmem:[%s0 + $0x1a4] sm:$0xf]
  %v127 = vld [vmem:[%s0 + $0x1a8] sm:$0xf]
  %v128 = vld [vmem:[%s0 + $0x1ac] sm:$0xf]
  %v129 = vld [vmem:[%s0 + $0x1b0] sm:$0xf]
  %v130 = vld [vmem:[%s0 + $0x1b4] sm:$0xf]
  %v131 = vld [vmem:[%s0 + $0x1b8] sm:$0xf]
  %v132 = vld [vmem:[%s0 + $0x1bc] sm:$0xf]
  %v133 = vld [vmem:[%s0 + $0x1c0] sm:$0xf]
  %v134 = vld [vmem:[%s0 + $0x1c4] sm:$0xf]
  %v135 = vld [vmem:[%s0 + $0x1c8] sm:$0xf]
  %v136 = vld [vmem:[%s0 + $0x1cc] sm:$0xf]
  %v137 = vld [vmem:[%s0 + $0x1d0] sm:$0xf]
  %v138 = vld [vmem:[%s0 + $0x1d4] sm:$0xf]
  %v139 = vld [vmem:[%s0 + $0x1d8] sm:$0xf]
  %v140 = vld [vmem:[%s0 + $0x1dc] sm:$0xf]
  %v141 = vld [vmem:[%s0 + $0x1e0] sm:$0xf]
  %v142 = vld [vmem:[%s0 + $0x1e4] sm:$0xf]
  %v143 = vld [vmem:[%s0 + $0x1e8] sm:$0xf]
  %v144 = vld [vmem:[%s0 + $0x1ec] sm:$0xf]
  %v145 = vld [vmem:[%s0 + $0x1f0] sm:$0xf]
  %v146 = vld [vmem:[%s0 + $0x1f4] sm:$0xf]
  %v147 = vld [vmem:[%s0 + $0x1f8] sm:$0xf]
  %v148 = vld [vmem:[%s0 + $0x1fc] sm:$0xf]
  %v149 = vld [vmem:[%s0 + $0x200] sm:$0xf]
  %v150 = vld [vmem:[%s0 + $0x204] sm:$0xf]
  %v151 = vld [vmem:[%s0 + $0x208] sm:$0xf]
  %v152 = vld [vmem:[%s0 + $0x20c] sm:$0xf]
  %v153 = vld [vmem:[%s0 + $0x210] sm:$0xf]
  %v154 = vld [vmem:[%s0 + $0x214] sm:$0xf]
  %v155 = vld [vmem:[%s0 + $0x218] sm:$0xf]
  %v156 = vld [vmem:[%s0 + $0x21c] sm:$0xf]
  %v157 = vld [vmem:[%s0 + $0x220] sm:$0xf]
  %v158 = vld [vmem:[%s0 + $0x224] sm:$0xf]
  %v159 = vld [vmem:[%s0 + $0x228] sm:$0xf]
  %v160 = vld [vmem:[%s0 + $0x22c] sm:$0xf]
  %v161 = vld [vmem:[%s0 + $0x230] sm:$0xf]
  %v162 = vld [vmem:[%s0 + $0x234] sm:$0xf]
  %v163 = vld [vmem:[%s0 + $0x238] sm:$0xf]
  %v164 = vld [vmem:[%s0 + $0x23c] sm:$0xf]
  %v165 = vld [vmem:[%s0 + $0x240] sm:$0xf]
  %v166 = vld [vmem:[%s0 + $0x244] sm:$0xf]
  %v167 = vld [vmem:[%s0 + $0x248] sm:$0xf]
  %v168 = vld [vmem:[%s0 + $0x24c] sm:$0xf]
  %v169 = vld [vmem:[%s0 + $0x250] sm:$0xf]
  %v170 = vld [vmem:[%s0 + $0x254] sm:$0xf]
  %v171 = vld [vmem:[%s0 + $0x258] sm:$0xf]
  %v172 = vld [vmem:[%s0 + $0x25c] sm:$0xf]
  %v173 = vld [vmem:[%s0 + $0x260] sm:$0xf]
  %v174 = vld [vmem:[%s0 + $0x264] sm:$0xf]
  %v175 = vld [vmem:[%s0 + $0x268] sm:$0xf]
  %v176 = vld [vmem:[%s0 + $0x26c] sm:$0xf]
  %v177 = vld [vmem:[%s0 + $0x270] sm:$0xf]
  %v178 = vld [vmem:[%s0 + $0x274] sm:$0xf]
  %v179 = vld [vmem:[%s0 + $0x278] sm:$0xf]
  %v180 = vld [vmem:[%s0 + $0x27c] sm:$0xf]
  %v181 = vld [vmem:[%s0 + $0x280] sm:$0xf]
  %v182 = vld [vmem:[%s0 + $0x284] sm:$0xf]
  %v183 = vld [vmem:[%s0 + $0x288] sm:$0xf]
  %v184 = vld [vmem:[%s0 + $0x28c] sm:$0xf]
  %v185 = vld [vmem:[%s0 + $0x290] sm:$0xf]
  %v186 = vld [vmem:[%s0 + $0x294] sm:$0xf]
  %v187 = vld [vmem:[%s0 + $0x298] sm:$0xf]
  %v188 = vld [vmem:[%s0 + $0x29c] sm:$0xf]
  %v189 = vld [vmem:[%s0 + $0x2a0] sm:$0xf]
  %v190 = vld [vmem:[%s0 + $0x2a4] sm:$0xf]
  %v191 = vld [vmem:[%s0 + $0x2a8] sm:$0xf]
  %v192 = vld [vmem:[%s0 + $0x2ac] sm:$0xf]
  %v193 = vld [vmem:[%s0 + $0x2b0] sm:$0xf]
  %v194 = vld [vmem:[%s0 + $0x2b4] sm:$0xf]
  %v195 = vld [vmem:[%s0 + $0x2b8] sm:$0xf]
  %v196 = vld [vmem:[%s0 + $0x2bc] sm:$0xf]
  %v197 = vld [vmem:[%s0 + $0x2c0] sm:$0xf]
  %v198 = vld [vmem:[%s0 + $0x2c4] sm:$0xf]
  %v199 = vld [vmem:[%s0 + $0x2c8] sm:$0xf]
  %v200 = vld [vmem:[%s0 + $0x2cc] sm:$0xf]
  %v201 = vld [vmem:[%s0 + $0x2d0] sm:$0xf]
  %v202 = vld [vmem:[%s0 + $0x2d4] sm:$0xf]
  %v203 = vld [vmem:[%s0 + $0x2d8] sm:$0xf]
  %v204 = vld [vmem:[%s0 + $0x2dc] sm:$0xf]
  %v205 = vld [vmem:[%s0 + $0x2e0] sm:$0xf]
  %v206 = vld [vmem:[%s0 + $0x2e4] sm:$0xf]
  %v207 = vld [vmem:[%s0 + $0x2e8] sm:$0xf]
  %v208 = vld [vmem:[%s0 + $0x2ec] sm:$0xf]
  %v209 = vld [vmem:[%s0 + $0x2f0] sm:$0xf]
  %v210 = vld [vmem:[%s0 + $0x2f4] sm:$0xf]
  %v211 = vld [vmem:[%s0 + $0x2f8] sm:$0xf]
  %v212 = vld [vmem:[%s0 + $0x2fc] sm:$0xf]
  %v213 = vld [vmem:[%s0 + $0x300] sm:$0xf]
  %v214 = vld [vmem:[%s0 + $0x304] sm:$0xf]
  %v215 = vld [vmem:[%s0 + $0x308] sm:$0xf]
  %v216 = vld [vmem:[%s0 + $0x30c] sm:$0xf]
  %v217 = vld [vmem:[%s0 + $0x310] sm:$0xf]
  %v218 = vld [vmem:[%s0 + $0x314] sm:$0xf]
  %v219 = vld [vmem:[%s0 + $0x318] sm:$0xf]
  %v220 = vld [vmem:[%s0 + $0x31c] sm:$0xf]
  %v221 = vld [vmem:[%s0 + $0x320] sm:$0xf]
  %v222 = vld [vmem:[%s0 + $0x324] sm:$0xf]
  %v223 = vld [vmem:[%s0 + $0x328] sm:$0xf]
  %v224 = vld [vmem:[%s0 + $0x32c] sm:$0xf]
  %v225 = vld [vmem:[%s0 + $0x330] sm:$0xf]
  %v226 = vld [vmem:[%s0 + $0x334] sm:$0xf]
  %v227 = vld [vmem:[%s0 + $0x338] sm:$0xf]
  %v228 = vld [vmem:[%s0 + $0x33c] sm:$0xf]
  %v229 = vld [vmem:[%s0 + $0x340] sm:$0xf]
  %v230 = vld [vmem:[%s0 + $0x344] sm:$0xf]
  %v231 = vld [vmem:[%s0 + $0x348] sm:$0xf]
  %v232 = vld [vmem:[%s0 + $0x34c] sm:$0xf]
  %v233 = vld [vmem:[%s0 + $0x350] sm:$0xf]
  %v234 = vld [vmem:[%s0 + $0x354] sm:$0xf]
  %v235 = vld [vmem:[%s0 + $0x358] sm:$0xf]
  %v236 = vld [vmem:[%s0 + $0x35c] sm:$0xf]
  %v237 = vld [vmem:[%s0 + $0x360] sm:$0xf]
  %v238 = vld [vmem:[%s0 + $0x364] sm:$0xf]
  %v239 = vld [vmem:[%s0 + $0x368] sm:$0xf]
  %v240 = vld [vmem:[%s0 + $0x36c] sm:$0xf]
  %v241 = vld [vmem:[%s0 + $0x370] sm:$0xf]
  %v242 = vld [vmem:[%s0 + $0x374] sm:$0xf]
  %v243 = vld [vmem:[%s0 + $0x378] sm:$0xf]
  %v244 = vld [vmem:[%s0 + $0x37c] sm:$0xf]
  %v245 = vld [vmem:[%s0 + $0x380] sm:$0xf]
  %v246 = vld [vmem:[%s0 + $0x384] sm:$0xf]
  %v247 = vld [vmem:[%s0 + $0x388] sm:$0xf]
  %v248 = vld [vmem:[%s0 + $0x38c] sm:$0xf]
  %v249 = vld [vmem:[%s0 + $0x390] sm:$0xf]
  %v250 = vld [vmem:[%s0 + $0x394] sm:$0xf]
  %v251 = vld [vmem:[%s0 + $0x398] sm:$0xf]
  %v252 = vld [vmem:[%s0 + $0x39c] sm:$0xf]
  %v253 = vld [vmem:[%s0 + $0x3a0] sm:$0xf]
  %v254 = vld [vmem:[%s0 + $0x3a4] sm:$0xf]
  %v255 = vld [vmem:[%s0 + $0x3a8] sm:$0xf]
  %v256 = vld [vmem:[%s0 + $0x3ac] sm:$0xf]
  %v257 = vld [vmem:[%s0 + $0x3b0] sm:$0xf]
  %v258 = vld [vmem:[%s0 + $0x3b4] sm:$0xf]
  %v259 = vld [vmem:[%s0 + $0x3b8] sm:$0xf]
  %v260 = vld [vmem:[%s0 + $0x3bc] sm:$0xf]
  %v261 = vld [vmem:[%s0 + $0x3c0] sm:$0xf]
  %v262 = vld [vmem:[%s0 + $0x3c4] sm:$0xf]
  %v263 = vld [vmem:[%s0 + $0x3c8] sm:$0xf]
  %v264 = vld [vmem:[%s0 + $0x3cc] sm:$0xf]
  %v265 = vld [vmem:[%s0 + $0x3d0] sm:$0xf]
  %v266 = vld [vmem:[%s0 + $0x3d4] sm:$0xf]
  %v267 = vld [vmem:[%s0 + $0x3d8] sm:$0xf]
  %v268 = vld [vmem:[%s0 + $0x3dc] sm:$0xf]
  %v269 = vld [vmem:[%s0 + $0x3e0] sm:$0xf]
  %v270 = vld [vmem:[%s0 + $0x3e4] sm:$0xf]
  %v271 = vld [vmem:[%s0 + $0x3e8] sm:$0xf]
  %v272 = vld [vmem:[%s0 + $0x3ec] sm:$0xf]
  %v273 = vld [vmem:[%s0 + $0x3f0] sm:$0xf]
  %v274 = vld [vmem:[%s0 + $0x3f4] sm:$0xf]
  %v275 = vld [vmem:[%s0 + $0x3f8] sm:$0xf]
  %v276 = vld [vmem:[%s0 + $0x3fc] sm:$0xf]
  %v277 = vld [vmem:[%s1] sm:$0xf]
  %v278 = vld [vmem:[%s1 + $0x4] sm:$0xf]
  %v279 = vld [vmem:[%s1 + $0x8] sm:$0xf]
  %v280 = vld [vmem:[%s1 + $0xc] sm:$0xf]
  %v281 = vld [vmem:[%s2] sm:$0x1]
  %v283 = vlaneseq
  %v284 = vshrl.u32 %v283, 7
  %v285 = vsub.s32 0, %v284
  %v286 = vrot.slane %v281, %v285
  %v544 = vunpack.c.l.b16 %v21
  %v545 = vunpack.c.l.b16 %v22
  %v546 = vunpack.c.l.b16 %v23
  %v547 = vunpack.c.l.b16 %v24
  %v548 = vunpack.c.l.b16 %v25
  %v549 = vunpack.c.l.b16 %v26
  %v550 = vunpack.c.l.b16 %v27
  %v551 = vunpack.c.l.b16 %v28
  %v552 = vunpack.c.l.b16 %v29
  %v553 = vunpack.c.l.b16 %v30
  %v554 = vunpack.c.l.b16 %v31
  %v555 = vunpack.c.l.b16 %v32
  %v556 = vunpack.c.l.b16 %v33
  %v557 = vunpack.c.l.b16 %v34
  %v558 = vunpack.c.l.b16 %v35
  %v559 = vunpack.c.l.b16 %v36
  %v560 = vunpack.c.l.b16 %v37
  %v561 = vunpack.c.l.b16 %v38
  %v562 = vunpack.c.l.b16 %v39
  %v563 = vunpack.c.l.b16 %v40
  %v564 = vunpack.c.l.b16 %v41
  %v565 = vunpack.c.l.b16 %v42
  %v566 = vunpack.c.l.b16 %v43
  %v567 = vunpack.c.l.b16 %v44
  %v568 = vunpack.c.l.b16 %v45
  %v569 = vunpack.c.l.b16 %v46
  %v570 = vunpack.c.l.b16 %v47
  %v571 = vunpack.c.l.b16 %v48
  %v572 = vunpack.c.l.b16 %v49
  %v573 = vunpack.c.l.b16 %v50
  %v574 = vunpack.c.l.b16 %v51
  %v575 = vunpack.c.l.b16 %v52
  %v576 = vunpack.c.l.b16 %v53
  %v577 = vunpack.c.l.b16 %v54
  %v578 = vunpack.c.l.b16 %v55
  %v579 = vunpack.c.l.b16 %v56
  %v580 = vunpack.c.l.b16 %v57
  %v581 = vunpack.c.l.b16 %v58
  %v582 = vunpack.c.l.b16 %v59
  %v583 = vunpack.c.l.b16 %v60
  %v584 = vunpack.c.l.b16 %v61
  %v585 = vunpack.c.l.b16 %v62
  %v586 = vunpack.c.l.b16 %v63
  %v587 = vunpack.c.l.b16 %v64
  %v588 = vunpack.c.l.b16 %v65
  %v589 = vunpack.c.l.b16 %v66
  %v590 = vunpack.c.l.b16 %v67
  %v591 = vunpack.c.l.b16 %v68
  %v592 = vunpack.c.l.b16 %v69
  %v593 = vunpack.c.l.b16 %v70
  %v594 = vunpack.c.l.b16 %v71
  %v595 = vunpack.c.l.b16 %v72
  %v596 = vunpack.c.l.b16 %v73
  %v597 = vunpack.c.l.b16 %v74
  %v598 = vunpack.c.l.b16 %v75
  %v599 = vunpack.c.l.b16 %v76
  %v600 = vunpack.c.l.b16 %v77
  %v601 = vunpack.c.l.b16 %v78
  %v602 = vunpack.c.l.b16 %v79
  %v603 = vunpack.c.l.b16 %v80
  %v604 = vunpack.c.l.b16 %v81
  %v605 = vunpack.c.l.b16 %v82
  %v606 = vunpack.c.l.b16 %v83
  %v607 = vunpack.c.l.b16 %v84
  %v608 = vunpack.c.l.b16 %v85
  %v609 = vunpack.c.l.b16 %v86
  %v610 = vunpack.c.l.b16 %v87
  %v611 = vunpack.c.l.b16 %v88
  %v612 = vunpack.c.l.b16 %v89
  %v613 = vunpack.c.l.b16 %v90
  %v614 = vunpack.c.l.b16 %v91
  %v615 = vunpack.c.l.b16 %v92
  %v616 = vunpack.c.l.b16 %v93
  %v617 = vunpack.c.l.b16 %v94
  %v618 = vunpack.c.l.b16 %v95
  %v619 = vunpack.c.l.b16 %v96
  %v620 = vunpack.c.l.b16 %v97
  %v621 = vunpack.c.l.b16 %v98
  %v622 = vunpack.c.l.b16 %v99
  %v623 = vunpack.c.l.b16 %v100
  %v624 = vunpack.c.l.b16 %v101
  %v625 = vunpack.c.l.b16 %v102
  %v626 = vunpack.c.l.b16 %v103
  %v627 = vunpack.c.l.b16 %v104
  %v628 = vunpack.c.l.b16 %v105
  %v629 = vunpack.c.l.b16 %v106
  %v630 = vunpack.c.l.b16 %v107
  %v631 = vunpack.c.l.b16 %v108
  %v632 = vunpack.c.l.b16 %v109
  %v633 = vunpack.c.l.b16 %v110
  %v634 = vunpack.c.l.b16 %v111
  %v635 = vunpack.c.l.b16 %v112
  %v636 = vunpack.c.l.b16 %v113
  %v637 = vunpack.c.l.b16 %v114
  %v638 = vunpack.c.l.b16 %v115
  %v639 = vunpack.c.l.b16 %v116
  %v640 = vunpack.c.l.b16 %v117
  %v641 = vunpack.c.l.b16 %v118
  %v642 = vunpack.c.l.b16 %v119
  %v643 = vunpack.c.l.b16 %v120
  %v644 = vunpack.c.l.b16 %v121
  %v645 = vunpack.c.l.b16 %v122
  %v646 = vunpack.c.l.b16 %v123
  %v647 = vunpack.c.l.b16 %v124
  %v648 = vunpack.c.l.b16 %v125
  %v649 = vunpack.c.l.b16 %v126
  %v650 = vunpack.c.l.b16 %v127
  %v651 = vunpack.c.l.b16 %v128
  %v652 = vunpack.c.l.b16 %v129
  %v653 = vunpack.c.l.b16 %v130
  %v654 = vunpack.c.l.b16 %v131
  %v655 = vunpack.c.l.b16 %v132
  %v656 = vunpack.c.l.b16 %v133
  %v657 = vunpack.c.l.b16 %v134
  %v658 = vunpack.c.l.b16 %v135
  %v659 = vunpack.c.l.b16 %v136
  %v660 = vunpack.c.l.b16 %v137
  %v661 = vunpack.c.l.b16 %v138
  %v662 = vunpack.c.l.b16 %v139
  %v663 = vunpack.c.l.b16 %v140
  %v664 = vunpack.c.l.b16 %v141
  %v665 = vunpack.c.l.b16 %v142
  %v666 = vunpack.c.l.b16 %v143
  %v667 = vunpack.c.l.b16 %v144
  %v668 = vunpack.c.l.b16 %v145
  %v669 = vunpack.c.l.b16 %v146
  %v670 = vunpack.c.l.b16 %v147
  %v671 = vunpack.c.l.b16 %v148
  %v672 = vunpack.c.l.b16 %v149
  %v673 = vunpack.c.l.b16 %v150
  %v674 = vunpack.c.l.b16 %v151
  %v675 = vunpack.c.l.b16 %v152
  %v676 = vunpack.c.l.b16 %v153
  %v677 = vunpack.c.l.b16 %v154
  %v678 = vunpack.c.l.b16 %v155
  %v679 = vunpack.c.l.b16 %v156
  %v680 = vunpack.c.l.b16 %v157
  %v681 = vunpack.c.l.b16 %v158
  %v682 = vunpack.c.l.b16 %v159
  %v683 = vunpack.c.l.b16 %v160
  %v684 = vunpack.c.l.b16 %v161
  %v685 = vunpack.c.l.b16 %v162
  %v686 = vunpack.c.l.b16 %v163
  %v687 = vunpack.c.l.b16 %v164
  %v688 = vunpack.c.l.b16 %v165
  %v689 = vunpack.c.l.b16 %v166
  %v690 = vunpack.c.l.b16 %v167
  %v691 = vunpack.c.l.b16 %v168
  %v692 = vunpack.c.l.b16 %v169
  %v693 = vunpack.c.l.b16 %v170
  %v694 = vunpack.c.l.b16 %v171
  %v695 = vunpack.c.l.b16 %v172
  %v696 = vunpack.c.l.b16 %v173
  %v697 = vunpack.c.l.b16 %v174
  %v698 = vunpack.c.l.b16 %v175
  %v699 = vunpack.c.l.b16 %v176
  %v700 = vunpack.c.l.b16 %v177
  %v701 = vunpack.c.l.b16 %v178
  %v702 = vunpack.c.l.b16 %v179
  %v703 = vunpack.c.l.b16 %v180
  %v704 = vunpack.c.l.b16 %v181
  %v705 = vunpack.c.l.b16 %v182
  %v706 = vunpack.c.l.b16 %v183
  %v707 = vunpack.c.l.b16 %v184
  %v708 = vunpack.c.l.b16 %v185
  %v709 = vunpack.c.l.b16 %v186
  %v710 = vunpack.c.l.b16 %v187
  %v711 = vunpack.c.l.b16 %v188
  %v712 = vunpack.c.l.b16 %v189
  %v713 = vunpack.c.l.b16 %v190
  %v714 = vunpack.c.l.b16 %v191
  %v715 = vunpack.c.l.b16 %v192
  %v716 = vunpack.c.l.b16 %v193
  %v717 = vunpack.c.l.b16 %v194
  %v718 = vunpack.c.l.b16 %v195
  %v719 = vunpack.c.l.b16 %v196
  %v720 = vunpack.c.l.b16 %v197
  %v721 = vunpack.c.l.b16 %v198
  %v722 = vunpack.c.l.b16 %v199
  %v723 = vunpack.c.l.b16 %v200
  %v724 = vunpack.c.l.b16 %v201
  %v725 = vunpack.c.l.b16 %v202
  %v726 = vunpack.c.l.b16 %v203
  %v727 = vunpack.c.l.b16 %v204
  %v728 = vunpack.c.l.b16 %v205
  %v729 = vunpack.c.l.b16 %v206
  %v730 = vunpack.c.l.b16 %v207
  %v731 = vunpack.c.l.b16 %v208
  %v732 = vunpack.c.l.b16 %v209
  %v733 = vunpack.c.l.b16 %v210
  %v734 = vunpack.c.l.b16 %v211
  %v735 = vunpack.c.l.b16 %v212
  %v736 = vunpack.c.l.b16 %v213
  %v737 = vunpack.c.l.b16 %v214
  %v738 = vunpack.c.l.b16 %v215
  %v739 = vunpack.c.l.b16 %v216
  %v740 = vunpack.c.l.b16 %v217
  %v741 = vunpack.c.l.b16 %v218
  %v742 = vunpack.c.l.b16 %v219
  %v743 = vunpack.c.l.b16 %v220
  %v744 = vunpack.c.l.b16 %v221
  %v745 = vunpack.c.l.b16 %v222
  %v746 = vunpack.c.l.b16 %v223
  %v747 = vunpack.c.l.b16 %v224
  %v748 = vunpack.c.l.b16 %v225
  %v749 = vunpack.c.l.b16 %v226
  %v750 = vunpack.c.l.b16 %v227
  %v751 = vunpack.c.l.b16 %v228
  %v752 = vunpack.c.l.b16 %v229
  %v753 = vunpack.c.l.b16 %v230
  %v754 = vunpack.c.l.b16 %v231
  %v755 = vunpack.c.l.b16 %v232
  %v756 = vunpack.c.l.b16 %v233
  %v757 = vunpack.c.l.b16 %v234
  %v758 = vunpack.c.l.b16 %v235
  %v759 = vunpack.c.l.b16 %v236
  %v760 = vunpack.c.l.b16 %v237
  %v761 = vunpack.c.l.b16 %v238
  %v762 = vunpack.c.l.b16 %v239
  %v763 = vunpack.c.l.b16 %v240
  %v764 = vunpack.c.l.b16 %v241
  %v765 = vunpack.c.l.b16 %v242
  %v766 = vunpack.c.l.b16 %v243
  %v767 = vunpack.c.l.b16 %v244
  %v768 = vunpack.c.l.b16 %v245
  %v769 = vunpack.c.l.b16 %v246
  %v770 = vunpack.c.l.b16 %v247
  %v771 = vunpack.c.l.b16 %v248
  %v772 = vunpack.c.l.b16 %v249
  %v773 = vunpack.c.l.b16 %v250
  %v774 = vunpack.c.l.b16 %v251
  %v775 = vunpack.c.l.b16 %v252
  %v776 = vunpack.c.l.b16 %v253
  %v777 = vunpack.c.l.b16 %v254
  %v778 = vunpack.c.l.b16 %v255
  %v779 = vunpack.c.l.b16 %v256
  %v780 = vunpack.c.l.b16 %v257
  %v781 = vunpack.c.l.b16 %v258
  %v782 = vunpack.c.l.b16 %v259
  %v783 = vunpack.c.l.b16 %v260
  %v784 = vunpack.c.l.b16 %v261
  %v785 = vunpack.c.l.b16 %v262
  %v786 = vunpack.c.l.b16 %v263
  %v787 = vunpack.c.l.b16 %v264
  %v788 = vunpack.c.l.b16 %v265
  %v789 = vunpack.c.l.b16 %v266
  %v790 = vunpack.c.l.b16 %v267
  %v791 = vunpack.c.l.b16 %v268
  %v792 = vunpack.c.l.b16 %v269
  %v793 = vunpack.c.l.b16 %v270
  %v794 = vunpack.c.l.b16 %v271
  %v795 = vunpack.c.l.b16 %v272
  %v796 = vunpack.c.l.b16 %v273
  %v797 = vunpack.c.l.b16 %v274
  %v798 = vunpack.c.l.b16 %v275
  %v799 = vunpack.c.l.b16 %v276
  %v800 = vpack.c.b16 %v545, %v544
  %v801 = vpack.c.b16 %v547, %v546
  %v802 = vpack.c.b16 %v549, %v548
  %v803 = vpack.c.b16 %v551, %v550
  %v804 = vpack.c.b16 %v553, %v552
  %v805 = vpack.c.b16 %v555, %v554
  %v806 = vpack.c.b16 %v557, %v556
  %v807 = vpack.c.b16 %v559, %v558
  %v808 = vpack.c.b16 %v561, %v560
  %v809 = vpack.c.b16 %v563, %v562
  %v810 = vpack.c.b16 %v565, %v564
  %v811 = vpack.c.b16 %v567, %v566
  %v812 = vpack.c.b16 %v569, %v568
  %v813 = vpack.c.b16 %v571, %v570
  %v814 = vpack.c.b16 %v573, %v572
  %v815 = vpack.c.b16 %v575, %v574
  %v816 = vpack.c.b16 %v577, %v576
  %v817 = vpack.c.b16 %v579, %v578
  %v818 = vpack.c.b16 %v581, %v580
  %v819 = vpack.c.b16 %v583, %v582
  %v820 = vpack.c.b16 %v585, %v584
  %v821 = vpack.c.b16 %v587, %v586
  %v822 = vpack.c.b16 %v589, %v588
  %v823 = vpack.c.b16 %v591, %v590
  %v824 = vpack.c.b16 %v593, %v592
  %v825 = vpack.c.b16 %v595, %v594
  %v826 = vpack.c.b16 %v597, %v596
  %v827 = vpack.c.b16 %v599, %v598
  %v828 = vpack.c.b16 %v601, %v600
  %v829 = vpack.c.b16 %v603, %v602
  %v830 = vpack.c.b16 %v605, %v604
  %v831 = vpack.c.b16 %v607, %v606
  %v832 = vpack.c.b16 %v609, %v608
  %v833 = vpack.c.b16 %v611, %v610
  %v834 = vpack.c.b16 %v613, %v612
  %v835 = vpack.c.b16 %v615, %v614
  %v836 = vpack.c.b16 %v617, %v616
  %v837 = vpack.c.b16 %v619, %v618
  %v838 = vpack.c.b16 %v621, %v620
  %v839 = vpack.c.b16 %v623, %v622
  %v840 = vpack.c.b16 %v625, %v624
  %v841 = vpack.c.b16 %v627, %v626
  %v842 = vpack.c.b16 %v629, %v628
  %v843 = vpack.c.b16 %v631, %v630
  %v844 = vpack.c.b16 %v633, %v632
  %v845 = vpack.c.b16 %v635, %v634
  %v846 = vpack.c.b16 %v637, %v636
  %v847 = vpack.c.b16 %v639, %v638
  %v848 = vpack.c.b16 %v641, %v640
  %v849 = vpack.c.b16 %v643, %v642
  %v850 = vpack.c.b16 %v645, %v644
  %v851 = vpack.c.b16 %v647, %v646
  %v852 = vpack.c.b16 %v649, %v648
  %v853 = vpack.c.b16 %v651, %v650
  %v854 = vpack.c.b16 %v653, %v652
  %v855 = vpack.c.b16 %v655, %v654
  %v856 = vpack.c.b16 %v657, %v656
  %v857 = vpack.c.b16 %v659, %v658
  %v858 = vpack.c.b16 %v661, %v660
  %v859 = vpack.c.b16 %v663, %v662
  %v860 = vpack.c.b16 %v665, %v664
  %v861 = vpack.c.b16 %v667, %v666
  %v862 = vpack.c.b16 %v669, %v668
  %v863 = vpack.c.b16 %v671, %v670
  %v864 = vpack.c.b16 %v673, %v672
  %v865 = vpack.c.b16 %v675, %v674
  %v866 = vpack.c.b16 %v677, %v676
  %v867 = vpack.c.b16 %v679, %v678
  %v868 = vpack.c.b16 %v681, %v680
  %v869 = vpack.c.b16 %v683, %v682
  %v870 = vpack.c.b16 %v685, %v684
  %v871 = vpack.c.b16 %v687, %v686
  %v872 = vpack.c.b16 %v689, %v688
  %v873 = vpack.c.b16 %v691, %v690
  %v874 = vpack.c.b16 %v693, %v692
  %v875 = vpack.c.b16 %v695, %v694
  %v876 = vpack.c.b16 %v697, %v696
  %v877 = vpack.c.b16 %v699, %v698
  %v878 = vpack.c.b16 %v701, %v700
  %v879 = vpack.c.b16 %v703, %v702
  %v880 = vpack.c.b16 %v705, %v704
  %v881 = vpack.c.b16 %v707, %v706
  %v882 = vpack.c.b16 %v709, %v708
  %v883 = vpack.c.b16 %v711, %v710
  %v884 = vpack.c.b16 %v713, %v712
  %v885 = vpack.c.b16 %v715, %v714
  %v886 = vpack.c.b16 %v717, %v716
  %v887 = vpack.c.b16 %v719, %v718
  %v888 = vpack.c.b16 %v721, %v720
  %v889 = vpack.c.b16 %v723, %v722
  %v890 = vpack.c.b16 %v725, %v724
  %v891 = vpack.c.b16 %v727, %v726
  %v892 = vpack.c.b16 %v729, %v728
  %v893 = vpack.c.b16 %v731, %v730
  %v894 = vpack.c.b16 %v733, %v732
  %v895 = vpack.c.b16 %v735, %v734
  %v896 = vpack.c.b16 %v737, %v736
  %v897 = vpack.c.b16 %v739, %v738
  %v898 = vpack.c.b16 %v741, %v740
  %v899 = vpack.c.b16 %v743, %v742
  %v900 = vpack.c.b16 %v745, %v744
  %v901 = vpack.c.b16 %v747, %v746
  %v902 = vpack.c.b16 %v749, %v748
  %v903 = vpack.c.b16 %v751, %v750
  %v904 = vpack.c.b16 %v753, %v752
  %v905 = vpack.c.b16 %v755, %v754
  %v906 = vpack.c.b16 %v757, %v756
  %v907 = vpack.c.b16 %v759, %v758
  %v908 = vpack.c.b16 %v761, %v760
  %v909 = vpack.c.b16 %v763, %v762
  %v910 = vpack.c.b16 %v765, %v764
  %v911 = vpack.c.b16 %v767, %v766
  %v912 = vpack.c.b16 %v769, %v768
  %v913 = vpack.c.b16 %v771, %v770
  %v914 = vpack.c.b16 %v773, %v772
  %v915 = vpack.c.b16 %v775, %v774
  %v916 = vpack.c.b16 %v777, %v776
  %v917 = vpack.c.b16 %v779, %v778
  %v918 = vpack.c.b16 %v781, %v780
  %v919 = vpack.c.b16 %v783, %v782
  %v920 = vpack.c.b16 %v785, %v784
  %v921 = vpack.c.b16 %v787, %v786
  %v922 = vpack.c.b16 %v789, %v788
  %v923 = vpack.c.b16 %v791, %v790
  %v924 = vpack.c.b16 %v793, %v792
  %v925 = vpack.c.b16 %v795, %v794
  %v926 = vpack.c.b16 %v797, %v796
  %v927 = vpack.c.b16 %v799, %v798
  %v932 = vunpack.c.l.b16 %v277
  %v933 = vunpack.c.l.b16 %v278
  %v934 = vunpack.c.l.b16 %v279
  %v935 = vunpack.c.l.b16 %v280
  %v936 = vpack.c.b16 %v933, %v932
  %v937 = vpack.c.b16 %v935, %v934
  %vm940 = vcmask 261120
  %v942 = vsel %vm940, %v800, 0
  %v945 = vsel %vm940, %v801, 0
  %v948 = vsel %vm940, %v802, 0
  %v951 = vsel %vm940, %v803, 0
  %v954 = vsel %vm940, %v804, 0
  %v957 = vsel %vm940, %v805, 0
  %v960 = vsel %vm940, %v806, 0
  %v963 = vsel %vm940, %v807, 0
  %v966 = vsel %vm940, %v808, 0
  %v969 = vsel %vm940, %v809, 0
  %v972 = vsel %vm940, %v810, 0
  %v975 = vsel %vm940, %v811, 0
  %v978 = vsel %vm940, %v812, 0
  %v981 = vsel %vm940, %v813, 0
  %v984 = vsel %vm940, %v814, 0
  %v987 = vsel %vm940, %v815, 0
  %v990 = vsel %vm940, %v816, 0
  %v993 = vsel %vm940, %v817, 0
  %v996 = vsel %vm940, %v818, 0
  %v999 = vsel %vm940, %v819, 0
  %v1002 = vsel %vm940, %v820, 0
  %v1005 = vsel %vm940, %v821, 0
  %v1008 = vsel %vm940, %v822, 0
  %v1011 = vsel %vm940, %v823, 0
  %v1014 = vsel %vm940, %v824, 0
  %v1017 = vsel %vm940, %v825, 0
  %v1020 = vsel %vm940, %v826, 0
  %v1023 = vsel %vm940, %v827, 0
  %v1026 = vsel %vm940, %v828, 0
  %v1029 = vsel %vm940, %v829, 0
  %v1032 = vsel %vm940, %v830, 0
  %v1035 = vsel %vm940, %v831, 0
  %v1038 = vsel %vm940, %v832, 0
  %v1041 = vsel %vm940, %v833, 0
  %v1044 = vsel %vm940, %v834, 0
  %v1047 = vsel %vm940, %v835, 0
  %v1050 = vsel %vm940, %v836, 0
  %v1053 = vsel %vm940, %v837, 0
  %v1056 = vsel %vm940, %v838, 0
  %v1059 = vsel %vm940, %v839, 0
  %v1062 = vsel %vm940, %v840, 0
  %v1065 = vsel %vm940, %v841, 0
  %v1068 = vsel %vm940, %v842, 0
  %v1071 = vsel %vm940, %v843, 0
  %v1074 = vsel %vm940, %v844, 0
  %v1077 = vsel %vm940, %v845, 0
  %v1080 = vsel %vm940, %v846, 0
  %v1083 = vsel %vm940, %v847, 0
  %v1086 = vsel %vm940, %v848, 0
  %v1089 = vsel %vm940, %v849, 0
  %v1092 = vsel %vm940, %v850, 0
  %v1095 = vsel %vm940, %v851, 0
  %v1098 = vsel %vm940, %v852, 0
  %v1101 = vsel %vm940, %v853, 0
  %v1104 = vsel %vm940, %v854, 0
  %v1107 = vsel %vm940, %v855, 0
  %v1110 = vsel %vm940, %v856, 0
  %v1113 = vsel %vm940, %v857, 0
  %v1116 = vsel %vm940, %v858, 0
  %v1119 = vsel %vm940, %v859, 0
  %v1122 = vsel %vm940, %v860, 0
  %v1125 = vsel %vm940, %v861, 0
  %v1128 = vsel %vm940, %v862, 0
  %v1131 = vsel %vm940, %v863, 0
  %v1134 = vsel %vm940, %v864, 0
  %v1137 = vsel %vm940, %v865, 0
  %v1140 = vsel %vm940, %v866, 0
  %v1143 = vsel %vm940, %v867, 0
  %v1146 = vsel %vm940, %v868, 0
  %v1149 = vsel %vm940, %v869, 0
  %v1152 = vsel %vm940, %v870, 0
  %v1155 = vsel %vm940, %v871, 0
  %v1158 = vsel %vm940, %v872, 0
  %v1161 = vsel %vm940, %v873, 0
  %v1164 = vsel %vm940, %v874, 0
  %v1167 = vsel %vm940, %v875, 0
  %v1170 = vsel %vm940, %v876, 0
  %v1173 = vsel %vm940, %v877, 0
  %v1176 = vsel %vm940, %v878, 0
  %v1179 = vsel %vm940, %v879, 0
  %v1182 = vsel %vm940, %v880, 0
  %v1185 = vsel %vm940, %v881, 0
  %v1188 = vsel %vm940, %v882, 0
  %v1191 = vsel %vm940, %v883, 0
  %v1194 = vsel %vm940, %v884, 0
  %v1197 = vsel %vm940, %v885, 0
  %v1200 = vsel %vm940, %v886, 0
  %v1203 = vsel %vm940, %v887, 0
  %v1206 = vsel %vm940, %v888, 0
  %v1209 = vsel %vm940, %v889, 0
  %v1212 = vsel %vm940, %v890, 0
  %v1215 = vsel %vm940, %v891, 0
  %v1218 = vsel %vm940, %v892, 0
  %v1221 = vsel %vm940, %v893, 0
  %v1224 = vsel %vm940, %v894, 0
  %v1227 = vsel %vm940, %v895, 0
  %v1230 = vsel %vm940, %v896, 0
  %v1233 = vsel %vm940, %v897, 0
  %v1236 = vsel %vm940, %v898, 0
  %v1239 = vsel %vm940, %v899, 0
  %v1242 = vsel %vm940, %v900, 0
  %v1245 = vsel %vm940, %v901, 0
  %v1248 = vsel %vm940, %v902, 0
  %v1251 = vsel %vm940, %v903, 0
  %v1254 = vsel %vm940, %v904, 0
  %v1257 = vsel %vm940, %v905, 0
  %v1260 = vsel %vm940, %v906, 0
  %v1263 = vsel %vm940, %v907, 0
  %v1266 = vsel %vm940, %v908, 0
  %v1269 = vsel %vm940, %v909, 0
  %v1272 = vsel %vm940, %v910, 0
  %v1275 = vsel %vm940, %v911, 0
  %v1278 = vsel %vm940, %v912, 0
  %v1281 = vsel %vm940, %v913, 0
  %v1284 = vsel %vm940, %v914, 0
  %v1287 = vsel %vm940, %v915, 0
  %v1290 = vsel %vm940, %v916, 0
  %v1293 = vsel %vm940, %v917, 0
  %v1296 = vsel %vm940, %v918, 0
  %v1299 = vsel %vm940, %v919, 0
  %v1302 = vsel %vm940, %v920, 0
  %v1305 = vsel %vm940, %v921, 0
  %v1308 = vsel %vm940, %v922, 0
  %v1311 = vsel %vm940, %v923, 0
  %v1314 = vsel %vm940, %v924, 0
  %v1317 = vsel %vm940, %v925, 0
  %v1320 = vsel %vm940, %v926, 0
  %v1323 = vsel %vm940, %v927, 0
  %1325 = vmatprep.subr.bf16.mxu0 0
  %1326 = vmatpush1.bf16.msra.mxu0 %v936
  %1327 = vmatprep.subr.bf16.mxu0 0
  %1328 = vmatpush1.bf16.msra.mxu0 %v937
  %1329 = vmatprep.subr.bf16.mxu0 0
  %1330 = vmatpush1.bf16.msra.mxu0 0
  %1331 = vmatprep.subr.bf16.mxu0 0
  %1332 = vmatpush1.bf16.msra.mxu0 0
  %1333 = vmatprep.subr.bf16.mxu0 0
  %1334 = vmatpush1.bf16.msra.mxu0 0
  %1335 = vmatprep.subr.bf16.mxu0 0
  %1336 = vmatpush1.bf16.msra.mxu0 0
  %1337 = vmatprep.subr.bf16.mxu0 0
  %1338 = vmatpush1.bf16.msra.mxu0 0
  %1339 = vmatprep.subr.bf16.mxu0 0
  %1340 = vmatpush1.bf16.msra.mxu0 0
  %1341 = vmatprep.subr.bf16.mxu0 0
  %1342 = vmatpush1.bf16.msra.mxu0 0
  %1343 = vmatprep.subr.bf16.mxu0 0
  %1344 = vmatpush1.bf16.msra.mxu0 0
  %1345 = vmatprep.subr.bf16.mxu0 0
  %1346 = vmatpush1.bf16.msra.mxu0 0
  %1347 = vmatprep.subr.bf16.mxu0 0
  %1348 = vmatpush1.bf16.msra.mxu0 0
  %1349 = vmatprep.subr.bf16.mxu0 0
  %1350 = vmatpush1.bf16.msra.mxu0 0
  %1351 = vmatprep.subr.bf16.mxu0 0
  %1352 = vmatpush1.bf16.msra.mxu0 0
  %1353 = vmatprep.subr.bf16.mxu0 0
  %1354 = vmatpush1.bf16.msra.mxu0 0
  %1355 = vmatprep.subr.bf16.mxu0 0
  %1356 = vmatpush1.bf16.msra.mxu0 0
  %1357 = vmatprep.mubr.bf16.mxu0 0
  %1358 = vmatmul.mubr.bf16.gmra.mrb[0].mxu0 %v942
  %v1359 = vpop.f32.mrb[0].mxu0
  %v1360 = vadd.f32 %v286, %v1359
  %v1361 = vpop.f32.mrb[0].mxu0
  %v1362 = vpop.f32.mrb[0].mxu0
  %v1363 = vadd.f32 %v286, %v1362
  %v1364 = vpop.f32.mrb[0].mxu0
  %1365 = vmatprep.mubr.bf16.mxu0 0
  %1366 = vmatmul.mubr.bf16.gmra.mrb[0].mxu0 %v945
  %v1367 = vpop.f32.mrb[0].mxu0
  %v1368 = vadd.f32 %v286, %v1367
  %v1369 = vpop.f32.mrb[0].mxu0
  %v1370 = vpop.f32.mrb[0].mxu0
  %v1371 = vadd.f32 %v286, %v1370
  %v1372 = vpop.f32.mrb[0].mxu0
  %1373 = vmatprep.mubr.bf16.mxu0 0
  %1374 = vmatmul.mubr.bf16.gmra.mrb[0].mxu0 %v948
  %v1375 = vpop.f32.mrb[0].mxu0
  %v1376 = vadd.f32 %v286, %v1375
  %v1377 = vpop.f32.mrb[0].mxu0
  %v1378 = vpop.f32.mrb[0].mxu0
  %v1379 = vadd.f32 %v286, %v1378
  %v1380 = vpop.f32.mrb[0].mxu0
  %1381 = vmatprep.mubr.bf16.mxu0 0
  %1382 = vmatmul.mubr.bf16.gmra.mrb[0].mxu0 %v951
  %v1383 = vpop.f32.mrb[0].mxu0
  %v1384 = vadd.f32 %v286, %v1383
  %v1385 = vpop.f32.mrb[0].mxu0
  %v1386 = vpop.f32.mrb[0].mxu0
  %v1387 = vadd.f32 %v286, %v1386
  %v1388 = vpop.f32.mrb[0].mxu0
  %1389 = vmatprep.mubr.bf16.mxu0 0
  %1390 = vmatmul.mubr.bf16.gmra.mrb[0].mxu0 %v954
  %v1391 = vpop.f32.mrb[0].mxu0
  %v1392 = vadd.f32 %v286, %v1391
  %v1393 = vpop.f32.mrb[0].mxu0
  %v1394 = vpop.f32.mrb[0].mxu0
  %v1395 = vadd.f32 %v286, %v1394
  %v1396 = vpop.f32.mrb[0].mxu0
  %1397 = vmatprep.mubr.bf16.mxu0 0
  %1398 = vmatmul.mubr.bf16.gmra.mrb[0].mxu0 %v957
  %v1399 = vpop.f32.mrb[0].mxu0
  %v1400 = vadd.f32 %v286, %v1399
  %v1401 = vpop.f32.mrb[0].mxu0
  %v1402 = vpop.f32.mrb[0].mxu0
  %v1403 = vadd.f32 %v286, %v1402
  %v1404 = vpop.f32.mrb[0].mxu0
  %1405 = vmatprep.mubr.bf16.mxu0 0
  %1406 = vmatmul.mubr.bf16.gmra.mrb[0].mxu0 %v960
  %v1407 = vpop.f32.mrb[0].mxu0
  %v1408 = vadd.f32 %v286, %v1407
  %v1409 = vpop.f32.mrb[0].mxu0
  %v1410 = vpop.f32.mrb[0].mxu0
  %v1411 = vadd.f32 %v286, %v1410
  %v1412 = vpop.f32.mrb[0].mxu0
  %1413 = vmatprep.mubr.bf16.mxu0 0
  %1414 = vmatmul.mubr.bf16.gmra.mrb[0].mxu0 %v963
  %v1415 = vpop.f32.mrb[0].mxu0
  %v1416 = vadd.f32 %v286, %v1415
  %v1417 = vpop.f32.mrb[0].mxu0
  %v1418 = vpop.f32.mrb[0].mxu0
  %v1419 = vadd.f32 %v286, %v1418
  %v1420 = vpop.f32.mrb[0].mxu0
  %1421 = vmatprep.mubr.bf16.mxu0 0
  %1422 = vmatmul.mubr.bf16.gmra.mrb[0].mxu0 %v966
  %v1423 = vpop.f32.mrb[0].mxu0
  %v1424 = vadd.f32 %v286, %v1423
  %v1425 = vpop.f32.mrb[0].mxu0
  %v1426 = vpop.f32.mrb[0].mxu0
  %v1427 = vadd.f32 %v286, %v1426
  %v1428 = vpop.f32.mrb[0].mxu0
  %1429 = vmatprep.mubr.bf16.mxu0 0
  %1430 = vmatmul.mubr.bf16.gmra.mrb[0].mxu0 %v969
  %v1431 = vpop.f32.mrb[0].mxu0
  %v1432 = vadd.f32 %v286, %v1431
  %v1433 = vpop.f32.mrb[0].mxu0
  %v1434 = vpop.f32.mrb[0].mxu0
  %v1435 = vadd.f32 %v286, %v1434
  %v1436 = vpop.f32.mrb[0].mxu0
  %1437 = vmatprep.mubr.bf16.mxu0 0
  %1438 = vmatmul.mubr.bf16.gmra.mrb[0].mxu0 %v972
  %v1439 = vpop.f32.mrb[0].mxu0
  %v1440 = vadd.f32 %v286, %v1439
  %v1441 = vpop.f32.mrb[0].mxu0
  %v1442 = vpop.f32.mrb[0].mxu0
  %v1443 = vadd.f32 %v286, %v1442
  %v1444 = vpop.f32.mrb[0].mxu0
  %1445 = vmatprep.mubr.bf16.mxu0 0
  %1446 = vmatmul.mubr.bf16.gmra.mrb[0].mxu0 %v975
  %v1447 = vpop.f32.mrb[0].mxu0
  %v1448 = vadd.f32 %v286, %v1447
  %v1449 = vpop.f32.mrb[0].mxu0
  %v1450 = vpop.f32.mrb[0].mxu0
  %v1451 = vadd.f32 %v286, %v1450
  %v1452 = vpop.f32.mrb[0].mxu0
  %1453 = vmatprep.mubr.bf16.mxu0 0
  %1454 = vmatmul.mubr.bf16.gmra.mrb[0].mxu0 %v978
  %v1455 = vpop.f32.mrb[0].mxu0
  %v1456 = vadd.f32 %v286, %v1455
  %v1457 = vpop.f32.mrb[0].mxu0
  %v1458 = vpop.f32.mrb[0].mxu0
  %v1459 = vadd.f32 %v286, %v1458
  %v1460 = vpop.f32.mrb[0].mxu0
  %1461 = vmatprep.mubr.bf16.mxu0 0
  %1462 = vmatmul.mubr.bf16.gmra.mrb[0].mxu0 %v981
  %v1463 = vpop.f32.mrb[0].mxu0
  %v1464 = vadd.f32 %v286, %v1463
  %v1465 = vpop.f32.mrb[0].mxu0
  %v1466 = vpop.f32.mrb[0].mxu0
  %v1467 = vadd.f32 %v286, %v1466
  %v1468 = vpop.f32.mrb[0].mxu0
  %1469 = vmatprep.mubr.bf16.mxu0 0
  %1470 = vmatmul.mubr.bf16.gmra.mrb[0].mxu0 %v984
  %v1471 = vpop.f32.mrb[0].mxu0
  %v1472 = vadd.f32 %v286, %v1471
  %v1473 = vpop.f32.mrb[0].mxu0
  %v1474 = vpop.f32.mrb[0].mxu0
  %v1475 = vadd.f32 %v286, %v1474
  %v1476 = vpop.f32.mrb[0].mxu0
  %1477 = vmatprep.mubr.bf16.mxu0 0
  %1478 = vmatmul.mubr.bf16.gmra.mrb[0].mxu0 %v987
  %v1479 = vpop.f32.mrb[0].mxu0
  %v1480 = vadd.f32 %v286, %v1479
  %v1481 = vpop.f32.mrb[0].mxu0
  %v1482 = vpop.f32.mrb[0].mxu0
  %v1483 = vadd.f32 %v286, %v1482
  %v1484 = vpop.f32.mrb[0].mxu0
  %1485 = vmatprep.mubr.bf16.mxu0 0
  %1486 = vmatmul.mubr.bf16.gmra.mrb[0].mxu0 %v990
  %v1487 = vpop.f32.mrb[0].mxu0
  %v1488 = vadd.f32 %v286, %v1487
  %v1489 = vpop.f32.mrb[0].mxu0
  %v1490 = vpop.f32.mrb[0].mxu0
  %v1491 = vadd.f32 %v286, %v1490
  %v1492 = vpop.f32.mrb[0].mxu0
  %1493 = vmatprep.mubr.bf16.mxu0 0
  %1494 = vmatmul.mubr.bf16.gmra.mrb[0].mxu0 %v993
  %v1495 = vpop.f32.mrb[0].mxu0
  %v1496 = vadd.f32 %v286, %v1495
  %v1497 = vpop.f32.mrb[0].mxu0
  %v1498 = vpop.f32.mrb[0].mxu0
  %v1499 = vadd.f32 %v286, %v1498
  %v1500 = vpop.f32.mrb[0].mxu0
  %1501 = vmatprep.mubr.bf16.mxu0 0
  %1502 = vmatmul.mubr.bf16.gmra.mrb[0].mxu0 %v996
  %v1503 = vpop.f32.mrb[0].mxu0
  %v1504 = vadd.f32 %v286, %v1503
  %v1505 = vpop.f32.mrb[0].mxu0
  %v1506 = vpop.f32.mrb[0].mxu0
  %v1507 = vadd.f32 %v286, %v1506
  %v1508 = vpop.f32.mrb[0].mxu0
  %1509 = vmatprep.mubr.bf16.mxu0 0
  %1510 = vmatmul.mubr.bf16.gmra.mrb[0].mxu0 %v999
  %v1511 = vpop.f32.mrb[0].mxu0
  %v1512 = vadd.f32 %v286, %v1511
  %v1513 = vpop.f32.mrb[0].mxu0
  %v1514 = vpop.f32.mrb[0].mxu0
  %v1515 = vadd.f32 %v286, %v1514
  %v1516 = vpop.f32.mrb[0].mxu0
  %1517 = vmatprep.mubr.bf16.mxu0 0
  %1518 = vmatmul.mubr.bf16.gmra.mrb[0].mxu0 %v1002
  %v1519 = vpop.f32.mrb[0].mxu0
  %v1520 = vadd.f32 %v286, %v1519
  %v1521 = vpop.f32.mrb[0].mxu0
  %v1522 = vpop.f32.mrb[0].mxu0
  %v1523 = vadd.f32 %v286, %v1522
  %v1524 = vpop.f32.mrb[0].mxu0
  %1525 = vmatprep.mubr.bf16.mxu0 0
  %1526 = vmatmul.mubr.bf16.gmra.mrb[0].mxu0 %v1005
  %v1527 = vpop.f32.mrb[0].mxu0
  %v1528 = vadd.f32 %v286, %v1527
  %v1529 = vpop.f32.mrb[0].mxu0
  %v1530 = vpop.f32.mrb[0].mxu0
  %v1531 = vadd.f32 %v286, %v1530
  %v1532 = vpop.f32.mrb[0].mxu0
  %1533 = vmatprep.mubr.bf16.mxu0 0
  %1534 = vmatmul.mubr.bf16.gmra.mrb[0].mxu0 %v1008
  %v1535 = vpop.f32.mrb[0].mxu0
  %v1536 = vadd.f32 %v286, %v1535
  %v1537 = vpop.f32.mrb[0].mxu0
  %v1538 = vpop.f32.mrb[0].mxu0
  %v1539 = vadd.f32 %v286, %v1538
  %v1540 = vpop.f32.mrb[0].mxu0
  %1541 = vmatprep.mubr.bf16.mxu0 0
  %1542 = vmatmul.mubr.bf16.gmra.mrb[0].mxu0 %v1011
  %v1543 = vpop.f32.mrb[0].mxu0
  %v1544 = vadd.f32 %v286, %v1543
  %v1545 = vpop.f32.mrb[0].mxu0
  %v1546 = vpop.f32.mrb[0].mxu0
  %v1547 = vadd.f32 %v286, %v1546
  %v1548 = vpop.f32.mrb[0].mxu0
  %1549 = vmatprep.mubr.bf16.mxu0 0
  %1550 = vmatmul.mubr.bf16.gmra.mrb[0].mxu0 %v1014
  %v1551 = vpop.f32.mrb[0].mxu0
  %v1552 = vadd.f32 %v286, %v1551
  %v1553 = vpop.f32.mrb[0].mxu0
  %v1554 = vpop.f32.mrb[0].mxu0
  %v1555 = vadd.f32 %v286, %v1554
  %v1556 = vpop.f32.mrb[0].mxu0
  %1557 = vmatprep.mubr.bf16.mxu0 0
  %1558 = vmatmul.mubr.bf16.gmra.mrb[0].mxu0 %v1017
  %v1559 = vpop.f32.mrb[0].mxu0
  %v1560 = vadd.f32 %v286, %v1559
  %v1561 = vpop.f32.mrb[0].mxu0
  %v1562 = vpop.f32.mrb[0].mxu0
  %v1563 = vadd.f32 %v286, %v1562
  %v1564 = vpop.f32.mrb[0].mxu0
  %1565 = vmatprep.mubr.bf16.mxu0 0
  %1566 = vmatmul.mubr.bf16.gmra.mrb[0].mxu0 %v1020
  %v1567 = vpop.f32.mrb[0].mxu0
  %v1568 = vadd.f32 %v286, %v1567
  %v1569 = vpop.f32.mrb[0].mxu0
  %v1570 = vpop.f32.mrb[0].mxu0
  %v1571 = vadd.f32 %v286, %v1570
  %v1572 = vpop.f32.mrb[0].mxu0
  %1573 = vmatprep.mubr.bf16.mxu0 0
  %1574 = vmatmul.mubr.bf16.gmra.mrb[0].mxu0 %v1023
  %v1575 = vpop.f32.mrb[0].mxu0
  %v1576 = vadd.f32 %v286, %v1575
  %v1577 = vpop.f32.mrb[0].mxu0
  %v1578 = vpop.f32.mrb[0].mxu0
  %v1579 = vadd.f32 %v286, %v1578
  %v1580 = vpop.f32.mrb[0].mxu0
  %1581 = vmatprep.mubr.bf16.mxu0 0
  %1582 = vmatmul.mubr.bf16.gmra.mrb[0].mxu0 %v1026
  %v1583 = vpop.f32.mrb[0].mxu0
  %v1584 = vadd.f32 %v286, %v1583
  %v1585 = vpop.f32.mrb[0].mxu0
  %v1586 = vpop.f32.mrb[0].mxu0
  %v1587 = vadd.f32 %v286, %v1586
  %v1588 = vpop.f32.mrb[0].mxu0
  %1589 = vmatprep.mubr.bf16.mxu0 0
  %1590 = vmatmul.mubr.bf16.gmra.mrb[0].mxu0 %v1029
  %v1591 = vpop.f32.mrb[0].mxu0
  %v1592 = vadd.f32 %v286, %v1591
  %v1593 = vpop.f32.mrb[0].mxu0
  %v1594 = vpop.f32.mrb[0].mxu0
  %v1595 = vadd.f32 %v286, %v1594
  %v1596 = vpop.f32.mrb[0].mxu0
  %1597 = vmatprep.mubr.bf16.mxu0 0
  %1598 = vmatmul.mubr.bf16.gmra.mrb[0].mxu0 %v1032
  %v1599 = vpop.f32.mrb[0].mxu0
  %v1600 = vadd.f32 %v286, %v1599
  %v1601 = vpop.f32.mrb[0].mxu0
  %v1602 = vpop.f32.mrb[0].mxu0
  %v1603 = vadd.f32 %v286, %v1602
  %v1604 = vpop.f32.mrb[0].mxu0
  %1605 = vmatprep.mubr.bf16.mxu0 0
  %1606 = vmatmul.mubr.bf16.gmra.mrb[0].mxu0 %v1035
  %v1607 = vpop.f32.mrb[0].mxu0
  %v1608 = vadd.f32 %v286, %v1607
  %v1609 = vpop.f32.mrb[0].mxu0
  %v1610 = vpop.f32.mrb[0].mxu0
  %v1611 = vadd.f32 %v286, %v1610
  %v1612 = vpop.f32.mrb[0].mxu0
  %1613 = vmatprep.mubr.bf16.mxu0 0
  %1614 = vmatmul.mubr.bf16.gmra.mrb[0].mxu0 %v1038
  %v1615 = vpop.f32.mrb[0].mxu0
  %v1616 = vadd.f32 %v286, %v1615
  %v1617 = vpop.f32.mrb[0].mxu0
  %v1618 = vpop.f32.mrb[0].mxu0
  %v1619 = vadd.f32 %v286, %v1618
  %v1620 = vpop.f32.mrb[0].mxu0
  %1621 = vmatprep.mubr.bf16.mxu0 0
  %1622 = vmatmul.mubr.bf16.gmra.mrb[0].mxu0 %v1041
  %v1623 = vpop.f32.mrb[0].mxu0
  %v1624 = vadd.f32 %v286, %v1623
  %v1625 = vpop.f32.mrb[0].mxu0
  %v1626 = vpop.f32.mrb[0].mxu0
  %v1627 = vadd.f32 %v286, %v1626
  %v1628 = vpop.f32.mrb[0].mxu0
  %1629 = vmatprep.mubr.bf16.mxu0 0
  %1630 = vmatmul.mubr.bf16.gmra.mrb[0].mxu0 %v1044
  %v1631 = vpop.f32.mrb[0].mxu0
  %v1632 = vadd.f32 %v286, %v1631
  %v1633 = vpop.f32.mrb[0].mxu0
  %v1634 = vpop.f32.mrb[0].mxu0
  %v1635 = vadd.f32 %v286, %v1634
  %v1636 = vpop.f32.mrb[0].mxu0
  %1637 = vmatprep.mubr.bf16.mxu0 0
  %1638 = vmatmul.mubr.bf16.gmra.mrb[0].mxu0 %v1047
  %v1639 = vpop.f32.mrb[0].mxu0
  %v1640 = vadd.f32 %v286, %v1639
  %v1641 = vpop.f32.mrb[0].mxu0
  %v1642 = vpop.f32.mrb[0].mxu0
  %v1643 = vadd.f32 %v286, %v1642
  %v1644 = vpop.f32.mrb[0].mxu0
  %1645 = vmatprep.mubr.bf16.mxu0 0
  %1646 = vmatmul.mubr.bf16.gmra.mrb[0].mxu0 %v1050
  %v1647 = vpop.f32.mrb[0].mxu0
  %v1648 = vadd.f32 %v286, %v1647
  %v1649 = vpop.f32.mrb[0].mxu0
  %v1650 = vpop.f32.mrb[0].mxu0
  %v1651 = vadd.f32 %v286, %v1650
  %v1652 = vpop.f32.mrb[0].mxu0
  %1653 = vmatprep.mubr.bf16.mxu0 0
  %1654 = vmatmul.mubr.bf16.gmra.mrb[0].mxu0 %v1053
  %v1655 = vpop.f32.mrb[0].mxu0
  %v1656 = vadd.f32 %v286, %v1655
  %v1657 = vpop.f32.mrb[0].mxu0
  %v1658 = vpop.f32.mrb[0].mxu0
  %v1659 = vadd.f32 %v286, %v1658
  %v1660 = vpop.f32.mrb[0].mxu0
  %1661 = vmatprep.mubr.bf16.mxu0 0
  %1662 = vmatmul.mubr.bf16.gmra.mrb[0].mxu0 %v1056
  %v1663 = vpop.f32.mrb[0].mxu0
  %v1664 = vadd.f32 %v286, %v1663
  %v1665 = vpop.f32.mrb[0].mxu0
  %v1666 = vpop.f32.mrb[0].mxu0
  %v1667 = vadd.f32 %v286, %v1666
  %v1668 = vpop.f32.mrb[0].mxu0
  %1669 = vmatprep.mubr.bf16.mxu0 0
  %1670 = vmatmul.mubr.bf16.gmra.mrb[0].mxu0 %v1059
  %v1671 = vpop.f32.mrb[0].mxu0
  %v1672 = vadd.f32 %v286, %v1671
  %v1673 = vpop.f32.mrb[0].mxu0
  %v1674 = vpop.f32.mrb[0].mxu0
  %v1675 = vadd.f32 %v286, %v1674
  %v1676 = vpop.f32.mrb[0].mxu0
  %1677 = vmatprep.mubr.bf16.mxu0 0
  %1678 = vmatmul.mubr.bf16.gmra.mrb[0].mxu0 %v1062
  %v1679 = vpop.f32.mrb[0].mxu0
  %v1680 = vadd.f32 %v286, %v1679
  %v1681 = vpop.f32.mrb[0].mxu0
  %v1682 = vpop.f32.mrb[0].mxu0
  %v1683 = vadd.f32 %v286, %v1682
  %v1684 = vpop.f32.mrb[0].mxu0
  %1685 = vmatprep.mubr.bf16.mxu0 0
  %1686 = vmatmul.mubr.bf16.gmra.mrb[0].mxu0 %v1065
  %v1687 = vpop.f32.mrb[0].mxu0
  %v1688 = vadd.f32 %v286, %v1687
  %v1689 = vpop.f32.mrb[0].mxu0
  %v1690 = vpop.f32.mrb[0].mxu0
  %v1691 = vadd.f32 %v286, %v1690
  %v1692 = vpop.f32.mrb[0].mxu0
  %1693 = vmatprep.mubr.bf16.mxu0 0
  %1694 = vmatmul.mubr.bf16.gmra.mrb[0].mxu0 %v1068
  %v1695 = vpop.f32.mrb[0].mxu0
  %v1696 = vadd.f32 %v286, %v1695
  %v1697 = vpop.f32.mrb[0].mxu0
  %v1698 = vpop.f32.mrb[0].mxu0
  %v1699 = vadd.f32 %v286, %v1698
  %v1700 = vpop.f32.mrb[0].mxu0
  %1701 = vmatprep.mubr.bf16.mxu0 0
  %1702 = vmatmul.mubr.bf16.gmra.mrb[0].mxu0 %v1071
  %v1703 = vpop.f32.mrb[0].mxu0
  %v1704 = vadd.f32 %v286, %v1703
  %v1705 = vpop.f32.mrb[0].mxu0
  %v1706 = vpop.f32.mrb[0].mxu0
  %v1707 = vadd.f32 %v286, %v1706
  %v1708 = vpop.f32.mrb[0].mxu0
  %1709 = vmatprep.mubr.bf16.mxu0 0
  %1710 = vmatmul.mubr.bf16.gmra.mrb[0].mxu0 %v1074
  %v1711 = vpop.f32.mrb[0].mxu0
  %v1712 = vadd.f32 %v286, %v1711
  %v1713 = vpop.f32.mrb[0].mxu0
  %v1714 = vpop.f32.mrb[0].mxu0
  %v1715 = vadd.f32 %v286, %v1714
  %v1716 = vpop.f32.mrb[0].mxu0
  %1717 = vmatprep.mubr.bf16.mxu0 0
  %1718 = vmatmul.mubr.bf16.gmra.mrb[0].mxu0 %v1077
  %v1719 = vpop.f32.mrb[0].mxu0
  %v1720 = vadd.f32 %v286, %v1719
  %v1721 = vpop.f32.mrb[0].mxu0
  %v1722 = vpop.f32.mrb[0].mxu0
  %v1723 = vadd.f32 %v286, %v1722
  %v1724 = vpop.f32.mrb[0].mxu0
  %1725 = vmatprep.mubr.bf16.mxu0 0
  %1726 = vmatmul.mubr.bf16.gmra.mrb[0].mxu0 %v1080
  %v1727 = vpop.f32.mrb[0].mxu0
  %v1728 = vadd.f32 %v286, %v1727
  %v1729 = vpop.f32.mrb[0].mxu0
  %v1730 = vpop.f32.mrb[0].mxu0
  %v1731 = vadd.f32 %v286, %v1730
  %v1732 = vpop.f32.mrb[0].mxu0
  %1733 = vmatprep.mubr.bf16.mxu0 0
  %1734 = vmatmul.mubr.bf16.gmra.mrb[0].mxu0 %v1083
  %v1735 = vpop.f32.mrb[0].mxu0
  %v1736 = vadd.f32 %v286, %v1735
  %v1737 = vpop.f32.mrb[0].mxu0
  %v1738 = vpop.f32.mrb[0].mxu0
  %v1739 = vadd.f32 %v286, %v1738
  %v1740 = vpop.f32.mrb[0].mxu0
  %1741 = vmatprep.mubr.bf16.mxu0 0
  %1742 = vmatmul.mubr.bf16.gmra.mrb[0].mxu0 %v1086
  %v1743 = vpop.f32.mrb[0].mxu0
  %v1744 = vadd.f32 %v286, %v1743
  %v1745 = vpop.f32.mrb[0].mxu0
  %v1746 = vpop.f32.mrb[0].mxu0
  %v1747 = vadd.f32 %v286, %v1746
  %v1748 = vpop.f32.mrb[0].mxu0
  %1749 = vmatprep.mubr.bf16.mxu0 0
  %1750 = vmatmul.mubr.bf16.gmra.mrb[0].mxu0 %v1089
  %v1751 = vpop.f32.mrb[0].mxu0
  %v1752 = vadd.f32 %v286, %v1751
  %v1753 = vpop.f32.mrb[0].mxu0
  %v1754 = vpop.f32.mrb[0].mxu0
  %v1755 = vadd.f32 %v286, %v1754
  %v1756 = vpop.f32.mrb[0].mxu0
  %1757 = vmatprep.mubr.bf16.mxu0 0
  %1758 = vmatmul.mubr.bf16.gmra.mrb[0].mxu0 %v1092
  %v1759 = vpop.f32.mrb[0].mxu0
  %v1760 = vadd.f32 %v286, %v1759
  %v1761 = vpop.f32.mrb[0].mxu0
  %v1762 = vpop.f32.mrb[0].mxu0
  %v1763 = vadd.f32 %v286, %v1762
  %v1764 = vpop.f32.mrb[0].mxu0
  %1765 = vmatprep.mubr.bf16.mxu0 0
  %1766 = vmatmul.mubr.bf16.gmra.mrb[0].mxu0 %v1095
  %v1767 = vpop.f32.mrb[0].mxu0
  %v1768 = vadd.f32 %v286, %v1767
  %v1769 = vpop.f32.mrb[0].mxu0
  %v1770 = vpop.f32.mrb[0].mxu0
  %v1771 = vadd.f32 %v286, %v1770
  %v1772 = vpop.f32.mrb[0].mxu0
  %1773 = vmatprep.mubr.bf16.mxu0 0
  %1774 = vmatmul.mubr.bf16.gmra.mrb[0].mxu0 %v1098
  %v1775 = vpop.f32.mrb[0].mxu0
  %v1776 = vadd.f32 %v286, %v1775
  %v1777 = vpop.f32.mrb[0].mxu0
  %v1778 = vpop.f32.mrb[0].mxu0
  %v1779 = vadd.f32 %v286, %v1778
  %v1780 = vpop.f32.mrb[0].mxu0
  %1781 = vmatprep.mubr.bf16.mxu0 0
  %1782 = vmatmul.mubr.bf16.gmra.mrb[0].mxu0 %v1101
  %v1783 = vpop.f32.mrb[0].mxu0
  %v1784 = vadd.f32 %v286, %v1783
  %v1785 = vpop.f32.mrb[0].mxu0
  %v1786 = vpop.f32.mrb[0].mxu0
  %v1787 = vadd.f32 %v286, %v1786
  %v1788 = vpop.f32.mrb[0].mxu0
  %1789 = vmatprep.mubr.bf16.mxu0 0
  %1790 = vmatmul.mubr.bf16.gmra.mrb[0].mxu0 %v1104
  %v1791 = vpop.f32.mrb[0].mxu0
  %v1792 = vadd.f32 %v286, %v1791
  %v1793 = vpop.f32.mrb[0].mxu0
  %v1794 = vpop.f32.mrb[0].mxu0
  %v1795 = vadd.f32 %v286, %v1794
  %v1796 = vpop.f32.mrb[0].mxu0
  %1797 = vmatprep.mubr.bf16.mxu0 0
  %1798 = vmatmul.mubr.bf16.gmra.mrb[0].mxu0 %v1107
  %v1799 = vpop.f32.mrb[0].mxu0
  %v1800 = vadd.f32 %v286, %v1799
  %v1801 = vpop.f32.mrb[0].mxu0
  %v1802 = vpop.f32.mrb[0].mxu0
  %v1803 = vadd.f32 %v286, %v1802
  %v1804 = vpop.f32.mrb[0].mxu0
  %1805 = vmatprep.mubr.bf16.mxu0 0
  %1806 = vmatmul.mubr.bf16.gmra.mrb[0].mxu0 %v1110
  %v1807 = vpop.f32.mrb[0].mxu0
  %v1808 = vadd.f32 %v286, %v1807
  %v1809 = vpop.f32.mrb[0].mxu0
  %v1810 = vpop.f32.mrb[0].mxu0
  %v1811 = vadd.f32 %v286, %v1810
  %v1812 = vpop.f32.mrb[0].mxu0
  %1813 = vmatprep.mubr.bf16.mxu0 0
  %1814 = vmatmul.mubr.bf16.gmra.mrb[0].mxu0 %v1113
  %v1815 = vpop.f32.mrb[0].mxu0
  %v1816 = vadd.f32 %v286, %v1815
  %v1817 = vpop.f32.mrb[0].mxu0
  %v1818 = vpop.f32.mrb[0].mxu0
  %v1819 = vadd.f32 %v286, %v1818
  %v1820 = vpop.f32.mrb[0].mxu0
  %1821 = vmatprep.mubr.bf16.mxu0 0
  %1822 = vmatmul.mubr.bf16.gmra.mrb[0].mxu0 %v1116
  %v1823 = vpop.f32.mrb[0].mxu0
  %v1824 = vadd.f32 %v286, %v1823
  %v1825 = vpop.f32.mrb[0].mxu0
  %v1826 = vpop.f32.mrb[0].mxu0
  %v1827 = vadd.f32 %v286, %v1826
  %v1828 = vpop.f32.mrb[0].mxu0
  %1829 = vmatprep.mubr.bf16.mxu0 0
  %1830 = vmatmul.mubr.bf16.gmra.mrb[0].mxu0 %v1119
  %v1831 = vpop.f32.mrb[0].mxu0
  %v1832 = vadd.f32 %v286, %v1831
  %v1833 = vpop.f32.mrb[0].mxu0
  %v1834 = vpop.f32.mrb[0].mxu0
  %v1835 = vadd.f32 %v286, %v1834
  %v1836 = vpop.f32.mrb[0].mxu0
  %1837 = vmatprep.mubr.bf16.mxu0 0
  %1838 = vmatmul.mubr.bf16.gmra.mrb[0].mxu0 %v1122
  %v1839 = vpop.f32.mrb[0].mxu0
  %v1840 = vadd.f32 %v286, %v1839
  %v1841 = vpop.f32.mrb[0].mxu0
  %v1842 = vpop.f32.mrb[0].mxu0
  %v1843 = vadd.f32 %v286, %v1842
  %v1844 = vpop.f32.mrb[0].mxu0
  %1845 = vmatprep.mubr.bf16.mxu0 0
  %1846 = vmatmul.mubr.bf16.gmra.mrb[0].mxu0 %v1125
  %v1847 = vpop.f32.mrb[0].mxu0
  %v1848 = vadd.f32 %v286, %v1847
  %v1849 = vpop.f32.mrb[0].mxu0
  %v1850 = vpop.f32.mrb[0].mxu0
  %v1851 = vadd.f32 %v286, %v1850
  %v1852 = vpop.f32.mrb[0].mxu0
  %1853 = vmatprep.mubr.bf16.mxu0 0
  %1854 = vmatmul.mubr.bf16.gmra.mrb[0].mxu0 %v1128
  %v1855 = vpop.f32.mrb[0].mxu0
  %v1856 = vadd.f32 %v286, %v1855
  %v1857 = vpop.f32.mrb[0].mxu0
  %v1858 = vpop.f32.mrb[0].mxu0
  %v1859 = vadd.f32 %v286, %v1858
  %v1860 = vpop.f32.mrb[0].mxu0
  %1861 = vmatprep.mubr.bf16.mxu0 0
  %1862 = vmatmul.mubr.bf16.gmra.mrb[0].mxu0 %v1131
  %v1863 = vpop.f32.mrb[0].mxu0
  %v1864 = vadd.f32 %v286, %v1863
  %v1865 = vpop.f32.mrb[0].mxu0
  %v1866 = vpop.f32.mrb[0].mxu0
  %v1867 = vadd.f32 %v286, %v1866
  %v1868 = vpop.f32.mrb[0].mxu0
  %1869 = vmatprep.mubr.bf16.mxu0 0
  %1870 = vmatmul.mubr.bf16.gmra.mrb[0].mxu0 %v1134
  %v1871 = vpop.f32.mrb[0].mxu0
  %v1872 = vadd.f32 %v286, %v1871
  %v1873 = vpop.f32.mrb[0].mxu0
  %v1874 = vpop.f32.mrb[0].mxu0
  %v1875 = vadd.f32 %v286, %v1874
  %v1876 = vpop.f32.mrb[0].mxu0
  %1877 = vmatprep.mubr.bf16.mxu0 0
  %1878 = vmatmul.mubr.bf16.gmra.mrb[0].mxu0 %v1137
  %v1879 = vpop.f32.mrb[0].mxu0
  %v1880 = vadd.f32 %v286, %v1879
  %v1881 = vpop.f32.mrb[0].mxu0
  %v1882 = vpop.f32.mrb[0].mxu0
  %v1883 = vadd.f32 %v286, %v1882
  %v1884 = vpop.f32.mrb[0].mxu0
  %1885 = vmatprep.mubr.bf16.mxu0 0
  %1886 = vmatmul.mubr.bf16.gmra.mrb[0].mxu0 %v1140
  %v1887 = vpop.f32.mrb[0].mxu0
  %v1888 = vadd.f32 %v286, %v1887
  %v1889 = vpop.f32.mrb[0].mxu0
  %v1890 = vpop.f32.mrb[0].mxu0
  %v1891 = vadd.f32 %v286, %v1890
  %v1892 = vpop.f32.mrb[0].mxu0
  %1893 = vmatprep.mubr.bf16.mxu0 0
  %1894 = vmatmul.mubr.bf16.gmra.mrb[0].mxu0 %v1143
  %v1895 = vpop.f32.mrb[0].mxu0
  %v1896 = vadd.f32 %v286, %v1895
  %v1897 = vpop.f32.mrb[0].mxu0
  %v1898 = vpop.f32.mrb[0].mxu0
  %v1899 = vadd.f32 %v286, %v1898
  %v1900 = vpop.f32.mrb[0].mxu0
  %1901 = vmatprep.mubr.bf16.mxu0 0
  %1902 = vmatmul.mubr.bf16.gmra.mrb[0].mxu0 %v1146
  %v1903 = vpop.f32.mrb[0].mxu0
  %v1904 = vadd.f32 %v286, %v1903
  %v1905 = vpop.f32.mrb[0].mxu0
  %v1906 = vpop.f32.mrb[0].mxu0
  %v1907 = vadd.f32 %v286, %v1906
  %v1908 = vpop.f32.mrb[0].mxu0
  %1909 = vmatprep.mubr.bf16.mxu0 0
  %1910 = vmatmul.mubr.bf16.gmra.mrb[0].mxu0 %v1149
  %v1911 = vpop.f32.mrb[0].mxu0
  %v1912 = vadd.f32 %v286, %v1911
  %v1913 = vpop.f32.mrb[0].mxu0
  %v1914 = vpop.f32.mrb[0].mxu0
  %v1915 = vadd.f32 %v286, %v1914
  %v1916 = vpop.f32.mrb[0].mxu0
  %1917 = vmatprep.mubr.bf16.mxu0 0
  %1918 = vmatmul.mubr.bf16.gmra.mrb[0].mxu0 %v1152
  %v1919 = vpop.f32.mrb[0].mxu0
  %v1920 = vadd.f32 %v286, %v1919
  %v1921 = vpop.f32.mrb[0].mxu0
  %v1922 = vpop.f32.mrb[0].mxu0
  %v1923 = vadd.f32 %v286, %v1922
  %v1924 = vpop.f32.mrb[0].mxu0
  %1925 = vmatprep.mubr.bf16.mxu0 0
  %1926 = vmatmul.mubr.bf16.gmra.mrb[0].mxu0 %v1155
  %v1927 = vpop.f32.mrb[0].mxu0
  %v1928 = vadd.f32 %v286, %v1927
  %v1929 = vpop.f32.mrb[0].mxu0
  %v1930 = vpop.f32.mrb[0].mxu0
  %v1931 = vadd.f32 %v286, %v1930
  %v1932 = vpop.f32.mrb[0].mxu0
  %1933 = vmatprep.mubr.bf16.mxu0 0
  %1934 = vmatmul.mubr.bf16.gmra.mrb[0].mxu0 %v1158
  %v1935 = vpop.f32.mrb[0].mxu0
  %v1936 = vadd.f32 %v286, %v1935
  %v1937 = vpop.f32.mrb[0].mxu0
  %v1938 = vpop.f32.mrb[0].mxu0
  %v1939 = vadd.f32 %v286, %v1938
  %v1940 = vpop.f32.mrb[0].mxu0
  %1941 = vmatprep.mubr.bf16.mxu0 0
  %1942 = vmatmul.mubr.bf16.gmra.mrb[0].mxu0 %v1161
  %v1943 = vpop.f32.mrb[0].mxu0
  %v1944 = vadd.f32 %v286, %v1943
  %v1945 = vpop.f32.mrb[0].mxu0
  %v1946 = vpop.f32.mrb[0].mxu0
  %v1947 = vadd.f32 %v286, %v1946
  %v1948 = vpop.f32.mrb[0].mxu0
  %1949 = vmatprep.mubr.bf16.mxu0 0
  %1950 = vmatmul.mubr.bf16.gmra.mrb[0].mxu0 %v1164
  %v1951 = vpop.f32.mrb[0].mxu0
  %v1952 = vadd.f32 %v286, %v1951
  %v1953 = vpop.f32.mrb[0].mxu0
  %v1954 = vpop.f32.mrb[0].mxu0
  %v1955 = vadd.f32 %v286, %v1954
  %v1956 = vpop.f32.mrb[0].mxu0
  %1957 = vmatprep.mubr.bf16.mxu0 0
  %1958 = vmatmul.mubr.bf16.gmra.mrb[0].mxu0 %v1167
  %v1959 = vpop.f32.mrb[0].mxu0
  %v1960 = vadd.f32 %v286, %v1959
  %v1961 = vpop.f32.mrb[0].mxu0
  %v1962 = vpop.f32.mrb[0].mxu0
  %v1963 = vadd.f32 %v286, %v1962
  %v1964 = vpop.f32.mrb[0].mxu0
  %1965 = vmatprep.mubr.bf16.mxu0 0
  %1966 = vmatmul.mubr.bf16.gmra.mrb[0].mxu0 %v1170
  %v1967 = vpop.f32.mrb[0].mxu0
  %v1968 = vadd.f32 %v286, %v1967
  %v1969 = vpop.f32.mrb[0].mxu0
  %v1970 = vpop.f32.mrb[0].mxu0
  %v1971 = vadd.f32 %v286, %v1970
  %v1972 = vpop.f32.mrb[0].mxu0
  %1973 = vmatprep.mubr.bf16.mxu0 0
  %1974 = vmatmul.mubr.bf16.gmra.mrb[0].mxu0 %v1173
  %v1975 = vpop.f32.mrb[0].mxu0
  %v1976 = vadd.f32 %v286, %v1975
  %v1977 = vpop.f32.mrb[0].mxu0
  %v1978 = vpop.f32.mrb[0].mxu0
  %v1979 = vadd.f32 %v286, %v1978
  %v1980 = vpop.f32.mrb[0].mxu0
  %1981 = vmatprep.mubr.bf16.mxu0 0
  %1982 = vmatmul.mubr.bf16.gmra.mrb[0].mxu0 %v1176
  %v1983 = vpop.f32.mrb[0].mxu0
  %v1984 = vadd.f32 %v286, %v1983
  %v1985 = vpop.f32.mrb[0].mxu0
  %v1986 = vpop.f32.mrb[0].mxu0
  %v1987 = vadd.f32 %v286, %v1986
  %v1988 = vpop.f32.mrb[0].mxu0
  %1989 = vmatprep.mubr.bf16.mxu0 0
  %1990 = vmatmul.mubr.bf16.gmra.mrb[0].mxu0 %v1179
  %v1991 = vpop.f32.mrb[0].mxu0
  %v1992 = vadd.f32 %v286, %v1991
  %v1993 = vpop.f32.mrb[0].mxu0
  %v1994 = vpop.f32.mrb[0].mxu0
  %v1995 = vadd.f32 %v286, %v1994
  %v1996 = vpop.f32.mrb[0].mxu0
  %1997 = vmatprep.mubr.bf16.mxu0 0
  %1998 = vmatmul.mubr.bf16.gmra.mrb[0].mxu0 %v1182
  %v1999 = vpop.f32.mrb[0].mxu0
  %v2000 = vadd.f32 %v286, %v1999
  %v2001 = vpop.f32.mrb[0].mxu0
  %v2002 = vpop.f32.mrb[0].mxu0
  %v2003 = vadd.f32 %v286, %v2002
  %v2004 = vpop.f32.mrb[0].mxu0
  %2005 = vmatprep.mubr.bf16.mxu0 0
  %2006 = vmatmul.mubr.bf16.gmra.mrb[0].mxu0 %v1185
  %v2007 = vpop.f32.mrb[0].mxu0
  %v2008 = vadd.f32 %v286, %v2007
  %v2009 = vpop.f32.mrb[0].mxu0
  %v2010 = vpop.f32.mrb[0].mxu0
  %v2011 = vadd.f32 %v286, %v2010
  %v2012 = vpop.f32.mrb[0].mxu0
  %2013 = vmatprep.mubr.bf16.mxu0 0
  %2014 = vmatmul.mubr.bf16.gmra.mrb[0].mxu0 %v1188
  %v2015 = vpop.f32.mrb[0].mxu0
  %v2016 = vadd.f32 %v286, %v2015
  %v2017 = vpop.f32.mrb[0].mxu0
  %v2018 = vpop.f32.mrb[0].mxu0
  %v2019 = vadd.f32 %v286, %v2018
  %v2020 = vpop.f32.mrb[0].mxu0
  %2021 = vmatprep.mubr.bf16.mxu0 0
  %2022 = vmatmul.mubr.bf16.gmra.mrb[0].mxu0 %v1191
  %v2023 = vpop.f32.mrb[0].mxu0
  %v2024 = vadd.f32 %v286, %v2023
  %v2025 = vpop.f32.mrb[0].mxu0
  %v2026 = vpop.f32.mrb[0].mxu0
  %v2027 = vadd.f32 %v286, %v2026
  %v2028 = vpop.f32.mrb[0].mxu0
  %2029 = vmatprep.mubr.bf16.mxu0 0
  %2030 = vmatmul.mubr.bf16.gmra.mrb[0].mxu0 %v1194
  %v2031 = vpop.f32.mrb[0].mxu0
  %v2032 = vadd.f32 %v286, %v2031
  %v2033 = vpop.f32.mrb[0].mxu0
  %v2034 = vpop.f32.mrb[0].mxu0
  %v2035 = vadd.f32 %v286, %v2034
  %v2036 = vpop.f32.mrb[0].mxu0
  %2037 = vmatprep.mubr.bf16.mxu0 0
  %2038 = vmatmul.mubr.bf16.gmra.mrb[0].mxu0 %v1197
  %v2039 = vpop.f32.mrb[0].mxu0
  %v2040 = vadd.f32 %v286, %v2039
  %v2041 = vpop.f32.mrb[0].mxu0
  %v2042 = vpop.f32.mrb[0].mxu0
  %v2043 = vadd.f32 %v286, %v2042
  %v2044 = vpop.f32.mrb[0].mxu0
  %2045 = vmatprep.mubr.bf16.mxu0 0
  %2046 = vmatmul.mubr.bf16.gmra.mrb[0].mxu0 %v1200
  %v2047 = vpop.f32.mrb[0].mxu0
  %v2048 = vadd.f32 %v286, %v2047
  %v2049 = vpop.f32.mrb[0].mxu0
  %v2050 = vpop.f32.mrb[0].mxu0
  %v2051 = vadd.f32 %v286, %v2050
  %v2052 = vpop.f32.mrb[0].mxu0
  %2053 = vmatprep.mubr.bf16.mxu0 0
  %2054 = vmatmul.mubr.bf16.gmra.mrb[0].mxu0 %v1203
  %v2055 = vpop.f32.mrb[0].mxu0
  %v2056 = vadd.f32 %v286, %v2055
  %v2057 = vpop.f32.mrb[0].mxu0
  %v2058 = vpop.f32.mrb[0].mxu0
  %v2059 = vadd.f32 %v286, %v2058
  %v2060 = vpop.f32.mrb[0].mxu0
  %2061 = vmatprep.mubr.bf16.mxu0 0
  %2062 = vmatmul.mubr.bf16.gmra.mrb[0].mxu0 %v1206
  %v2063 = vpop.f32.mrb[0].mxu0
  %v2064 = vadd.f32 %v286, %v2063
  %v2065 = vpop.f32.mrb[0].mxu0
  %v2066 = vpop.f32.mrb[0].mxu0
  %v2067 = vadd.f32 %v286, %v2066
  %v2068 = vpop.f32.mrb[0].mxu0
  %2069 = vmatprep.mubr.bf16.mxu0 0
  %2070 = vmatmul.mubr.bf16.gmra.mrb[0].mxu0 %v1209
  %v2071 = vpop.f32.mrb[0].mxu0
  %v2072 = vadd.f32 %v286, %v2071
  %v2073 = vpop.f32.mrb[0].mxu0
  %v2074 = vpop.f32.mrb[0].mxu0
  %v2075 = vadd.f32 %v286, %v2074
  %v2076 = vpop.f32.mrb[0].mxu0
  %2077 = vmatprep.mubr.bf16.mxu0 0
  %2078 = vmatmul.mubr.bf16.gmra.mrb[0].mxu0 %v1212
  %v2079 = vpop.f32.mrb[0].mxu0
  %v2080 = vadd.f32 %v286, %v2079
  %v2081 = vpop.f32.mrb[0].mxu0
  %v2082 = vpop.f32.mrb[0].mxu0
  %v2083 = vadd.f32 %v286, %v2082
  %v2084 = vpop.f32.mrb[0].mxu0
  %2085 = vmatprep.mubr.bf16.mxu0 0
  %2086 = vmatmul.mubr.bf16.gmra.mrb[0].mxu0 %v1215
  %v2087 = vpop.f32.mrb[0].mxu0
  %v2088 = vadd.f32 %v286, %v2087
  %v2089 = vpop.f32.mrb[0].mxu0
  %v2090 = vpop.f32.mrb[0].mxu0
  %v2091 = vadd.f32 %v286, %v2090
  %v2092 = vpop.f32.mrb[0].mxu0
  %2093 = vmatprep.mubr.bf16.mxu0 0
  %2094 = vmatmul.mubr.bf16.gmra.mrb[0].mxu0 %v1218
  %v2095 = vpop.f32.mrb[0].mxu0
  %v2096 = vadd.f32 %v286, %v2095
  %v2097 = vpop.f32.mrb[0].mxu0
  %v2098 = vpop.f32.mrb[0].mxu0
  %v2099 = vadd.f32 %v286, %v2098
  %v2100 = vpop.f32.mrb[0].mxu0
  %2101 = vmatprep.mubr.bf16.mxu0 0
  %2102 = vmatmul.mubr.bf16.gmra.mrb[0].mxu0 %v1221
  %v2103 = vpop.f32.mrb[0].mxu0
  %v2104 = vadd.f32 %v286, %v2103
  %v2105 = vpop.f32.mrb[0].mxu0
  %v2106 = vpop.f32.mrb[0].mxu0
  %v2107 = vadd.f32 %v286, %v2106
  %v2108 = vpop.f32.mrb[0].mxu0
  %2109 = vmatprep.mubr.bf16.mxu0 0
  %2110 = vmatmul.mubr.bf16.gmra.mrb[0].mxu0 %v1224
  %v2111 = vpop.f32.mrb[0].mxu0
  %v2112 = vadd.f32 %v286, %v2111
  %v2113 = vpop.f32.mrb[0].mxu0
  %v2114 = vpop.f32.mrb[0].mxu0
  %v2115 = vadd.f32 %v286, %v2114
  %v2116 = vpop.f32.mrb[0].mxu0
  %2117 = vmatprep.mubr.bf16.mxu0 0
  %2118 = vmatmul.mubr.bf16.gmra.mrb[0].mxu0 %v1227
  %v2119 = vpop.f32.mrb[0].mxu0
  %v2120 = vadd.f32 %v286, %v2119
  %v2121 = vpop.f32.mrb[0].mxu0
  %v2122 = vpop.f32.mrb[0].mxu0
  %v2123 = vadd.f32 %v286, %v2122
  %v2124 = vpop.f32.mrb[0].mxu0
  %2125 = vmatprep.mubr.bf16.mxu0 0
  %2126 = vmatmul.mubr.bf16.gmra.mrb[0].mxu0 %v1230
  %v2127 = vpop.f32.mrb[0].mxu0
  %v2128 = vadd.f32 %v286, %v2127
  %v2129 = vpop.f32.mrb[0].mxu0
  %v2130 = vpop.f32.mrb[0].mxu0
  %v2131 = vadd.f32 %v286, %v2130
  %v2132 = vpop.f32.mrb[0].mxu0
  %2133 = vmatprep.mubr.bf16.mxu0 0
  %2134 = vmatmul.mubr.bf16.gmra.mrb[0].mxu0 %v1233
  %v2135 = vpop.f32.mrb[0].mxu0
  %v2136 = vadd.f32 %v286, %v2135
  %v2137 = vpop.f32.mrb[0].mxu0
  %v2138 = vpop.f32.mrb[0].mxu0
  %v2139 = vadd.f32 %v286, %v2138
  %v2140 = vpop.f32.mrb[0].mxu0
  %2141 = vmatprep.mubr.bf16.mxu0 0
  %2142 = vmatmul.mubr.bf16.gmra.mrb[0].mxu0 %v1236
  %v2143 = vpop.f32.mrb[0].mxu0
  %v2144 = vadd.f32 %v286, %v2143
  %v2145 = vpop.f32.mrb[0].mxu0
  %v2146 = vpop.f32.mrb[0].mxu0
  %v2147 = vadd.f32 %v286, %v2146
  %v2148 = vpop.f32.mrb[0].mxu0
  %2149 = vmatprep.mubr.bf16.mxu0 0
  %2150 = vmatmul.mubr.bf16.gmra.mrb[0].mxu0 %v1239
  %v2151 = vpop.f32.mrb[0].mxu0
  %v2152 = vadd.f32 %v286, %v2151
  %v2153 = vpop.f32.mrb[0].mxu0
  %v2154 = vpop.f32.mrb[0].mxu0
  %v2155 = vadd.f32 %v286, %v2154
  %v2156 = vpop.f32.mrb[0].mxu0
  %2157 = vmatprep.mubr.bf16.mxu0 0
  %2158 = vmatmul.mubr.bf16.gmra.mrb[0].mxu0 %v1242
  %v2159 = vpop.f32.mrb[0].mxu0
  %v2160 = vadd.f32 %v286, %v2159
  %v2161 = vpop.f32.mrb[0].mxu0
  %v2162 = vpop.f32.mrb[0].mxu0
  %v2163 = vadd.f32 %v286, %v2162
  %v2164 = vpop.f32.mrb[0].mxu0
  %2165 = vmatprep.mubr.bf16.mxu0 0
  %2166 = vmatmul.mubr.bf16.gmra.mrb[0].mxu0 %v1245
  %v2167 = vpop.f32.mrb[0].mxu0
  %v2168 = vadd.f32 %v286, %v2167
  %v2169 = vpop.f32.mrb[0].mxu0
  %v2170 = vpop.f32.mrb[0].mxu0
  %v2171 = vadd.f32 %v286, %v2170
  %v2172 = vpop.f32.mrb[0].mxu0
  %2173 = vmatprep.mubr.bf16.mxu0 0
  %2174 = vmatmul.mubr.bf16.gmra.mrb[0].mxu0 %v1248
  %v2175 = vpop.f32.mrb[0].mxu0
  %v2176 = vadd.f32 %v286, %v2175
  %v2177 = vpop.f32.mrb[0].mxu0
  %v2178 = vpop.f32.mrb[0].mxu0
  %v2179 = vadd.f32 %v286, %v2178
  %v2180 = vpop.f32.mrb[0].mxu0
  %2181 = vmatprep.mubr.bf16.mxu0 0
  %2182 = vmatmul.mubr.bf16.gmra.mrb[0].mxu0 %v1251
  %v2183 = vpop.f32.mrb[0].mxu0
  %v2184 = vadd.f32 %v286, %v2183
  %v2185 = vpop.f32.mrb[0].mxu0
  %v2186 = vpop.f32.mrb[0].mxu0
  %v2187 = vadd.f32 %v286, %v2186
  %v2188 = vpop.f32.mrb[0].mxu0
  %2189 = vmatprep.mubr.bf16.mxu0 0
  %2190 = vmatmul.mubr.bf16.gmra.mrb[0].mxu0 %v1254
  %v2191 = vpop.f32.mrb[0].mxu0
  %v2192 = vadd.f32 %v286, %v2191
  %v2193 = vpop.f32.mrb[0].mxu0
  %v2194 = vpop.f32.mrb[0].mxu0
  %v2195 = vadd.f32 %v286, %v2194
  %v2196 = vpop.f32.mrb[0].mxu0
  %2197 = vmatprep.mubr.bf16.mxu0 0
  %2198 = vmatmul.mubr.bf16.gmra.mrb[0].mxu0 %v1257
  %v2199 = vpop.f32.mrb[0].mxu0
  %v2200 = vadd.f32 %v286, %v2199
  %v2201 = vpop.f32.mrb[0].mxu0
  %v2202 = vpop.f32.mrb[0].mxu0
  %v2203 = vadd.f32 %v286, %v2202
  %v2204 = vpop.f32.mrb[0].mxu0
  %2205 = vmatprep.mubr.bf16.mxu0 0
  %2206 = vmatmul.mubr.bf16.gmra.mrb[0].mxu0 %v1260
  %v2207 = vpop.f32.mrb[0].mxu0
  %v2208 = vadd.f32 %v286, %v2207
  %v2209 = vpop.f32.mrb[0].mxu0
  %v2210 = vpop.f32.mrb[0].mxu0
  %v2211 = vadd.f32 %v286, %v2210
  %v2212 = vpop.f32.mrb[0].mxu0
  %2213 = vmatprep.mubr.bf16.mxu0 0
  %2214 = vmatmul.mubr.bf16.gmra.mrb[0].mxu0 %v1263
  %v2215 = vpop.f32.mrb[0].mxu0
  %v2216 = vadd.f32 %v286, %v2215
  %v2217 = vpop.f32.mrb[0].mxu0
  %v2218 = vpop.f32.mrb[0].mxu0
  %v2219 = vadd.f32 %v286, %v2218
  %v2220 = vpop.f32.mrb[0].mxu0
  %2221 = vmatprep.mubr.bf16.mxu0 0
  %2222 = vmatmul.mubr.bf16.gmra.mrb[0].mxu0 %v1266
  %v2223 = vpop.f32.mrb[0].mxu0
  %v2224 = vadd.f32 %v286, %v2223
  %v2225 = vpop.f32.mrb[0].mxu0
  %v2226 = vpop.f32.mrb[0].mxu0
  %v2227 = vadd.f32 %v286, %v2226
  %v2228 = vpop.f32.mrb[0].mxu0
  %2229 = vmatprep.mubr.bf16.mxu0 0
  %2230 = vmatmul.mubr.bf16.gmra.mrb[0].mxu0 %v1269
  %v2231 = vpop.f32.mrb[0].mxu0
  %v2232 = vadd.f32 %v286, %v2231
  %v2233 = vpop.f32.mrb[0].mxu0
  %v2234 = vpop.f32.mrb[0].mxu0
  %v2235 = vadd.f32 %v286, %v2234
  %v2236 = vpop.f32.mrb[0].mxu0
  %2237 = vmatprep.mubr.bf16.mxu0 0
  %2238 = vmatmul.mubr.bf16.gmra.mrb[0].mxu0 %v1272
  %v2239 = vpop.f32.mrb[0].mxu0
  %v2240 = vadd.f32 %v286, %v2239
  %v2241 = vpop.f32.mrb[0].mxu0
  %v2242 = vpop.f32.mrb[0].mxu0
  %v2243 = vadd.f32 %v286, %v2242
  %v2244 = vpop.f32.mrb[0].mxu0
  %2245 = vmatprep.mubr.bf16.mxu0 0
  %2246 = vmatmul.mubr.bf16.gmra.mrb[0].mxu0 %v1275
  %v2247 = vpop.f32.mrb[0].mxu0
  %v2248 = vadd.f32 %v286, %v2247
  %v2249 = vpop.f32.mrb[0].mxu0
  %v2250 = vpop.f32.mrb[0].mxu0
  %v2251 = vadd.f32 %v286, %v2250
  %v2252 = vpop.f32.mrb[0].mxu0
  %2253 = vmatprep.mubr.bf16.mxu0 0
  %2254 = vmatmul.mubr.bf16.gmra.mrb[0].mxu0 %v1278
  %v2255 = vpop.f32.mrb[0].mxu0
  %v2256 = vadd.f32 %v286, %v2255
  %v2257 = vpop.f32.mrb[0].mxu0
  %v2258 = vpop.f32.mrb[0].mxu0
  %v2259 = vadd.f32 %v286, %v2258
  %v2260 = vpop.f32.mrb[0].mxu0
  %2261 = vmatprep.mubr.bf16.mxu0 0
  %2262 = vmatmul.mubr.bf16.gmra.mrb[0].mxu0 %v1281
  %v2263 = vpop.f32.mrb[0].mxu0
  %v2264 = vadd.f32 %v286, %v2263
  %v2265 = vpop.f32.mrb[0].mxu0
  %v2266 = vpop.f32.mrb[0].mxu0
  %v2267 = vadd.f32 %v286, %v2266
  %v2268 = vpop.f32.mrb[0].mxu0
  %2269 = vmatprep.mubr.bf16.mxu0 0
  %2270 = vmatmul.mubr.bf16.gmra.mrb[0].mxu0 %v1284
  %v2271 = vpop.f32.mrb[0].mxu0
  %v2272 = vadd.f32 %v286, %v2271
  %v2273 = vpop.f32.mrb[0].mxu0
  %v2274 = vpop.f32.mrb[0].mxu0
  %v2275 = vadd.f32 %v286, %v2274
  %v2276 = vpop.f32.mrb[0].mxu0
  %2277 = vmatprep.mubr.bf16.mxu0 0
  %2278 = vmatmul.mubr.bf16.gmra.mrb[0].mxu0 %v1287
  %v2279 = vpop.f32.mrb[0].mxu0
  %v2280 = vadd.f32 %v286, %v2279
  %v2281 = vpop.f32.mrb[0].mxu0
  %v2282 = vpop.f32.mrb[0].mxu0
  %v2283 = vadd.f32 %v286, %v2282
  %v2284 = vpop.f32.mrb[0].mxu0
  %2285 = vmatprep.mubr.bf16.mxu0 0
  %2286 = vmatmul.mubr.bf16.gmra.mrb[0].mxu0 %v1290
  %v2287 = vpop.f32.mrb[0].mxu0
  %v2288 = vadd.f32 %v286, %v2287
  %v2289 = vpop.f32.mrb[0].mxu0
  %v2290 = vpop.f32.mrb[0].mxu0
  %v2291 = vadd.f32 %v286, %v2290
  %v2292 = vpop.f32.mrb[0].mxu0
  %2293 = vmatprep.mubr.bf16.mxu0 0
  %2294 = vmatmul.mubr.bf16.gmra.mrb[0].mxu0 %v1293
  %v2295 = vpop.f32.mrb[0].mxu0
  %v2296 = vadd.f32 %v286, %v2295
  %v2297 = vpop.f32.mrb[0].mxu0
  %v2298 = vpop.f32.mrb[0].mxu0
  %v2299 = vadd.f32 %v286, %v2298
  %v2300 = vpop.f32.mrb[0].mxu0
  %2301 = vmatprep.mubr.bf16.mxu0 0
  %2302 = vmatmul.mubr.bf16.gmra.mrb[0].mxu0 %v1296
  %v2303 = vpop.f32.mrb[0].mxu0
  %v2304 = vadd.f32 %v286, %v2303
  %v2305 = vpop.f32.mrb[0].mxu0
  %v2306 = vpop.f32.mrb[0].mxu0
  %v2307 = vadd.f32 %v286, %v2306
  %v2308 = vpop.f32.mrb[0].mxu0
  %2309 = vmatprep.mubr.bf16.mxu0 0
  %2310 = vmatmul.mubr.bf16.gmra.mrb[0].mxu0 %v1299
  %v2311 = vpop.f32.mrb[0].mxu0
  %v2312 = vadd.f32 %v286, %v2311
  %v2313 = vpop.f32.mrb[0].mxu0
  %v2314 = vpop.f32.mrb[0].mxu0
  %v2315 = vadd.f32 %v286, %v2314
  %v2316 = vpop.f32.mrb[0].mxu0
  %2317 = vmatprep.mubr.bf16.mxu0 0
  %2318 = vmatmul.mubr.bf16.gmra.mrb[0].mxu0 %v1302
  %v2319 = vpop.f32.mrb[0].mxu0
  %v2320 = vadd.f32 %v286, %v2319
  %v2321 = vpop.f32.mrb[0].mxu0
  %v2322 = vpop.f32.mrb[0].mxu0
  %v2323 = vadd.f32 %v286, %v2322
  %v2324 = vpop.f32.mrb[0].mxu0
  %2325 = vmatprep.mubr.bf16.mxu0 0
  %2326 = vmatmul.mubr.bf16.gmra.mrb[0].mxu0 %v1305
  %v2327 = vpop.f32.mrb[0].mxu0
  %v2328 = vadd.f32 %v286, %v2327
  %v2329 = vpop.f32.mrb[0].mxu0
  %v2330 = vpop.f32.mrb[0].mxu0
  %v2331 = vadd.f32 %v286, %v2330
  %v2332 = vpop.f32.mrb[0].mxu0
  %2333 = vmatprep.mubr.bf16.mxu0 0
  %2334 = vmatmul.mubr.bf16.gmra.mrb[0].mxu0 %v1308
  %v2335 = vpop.f32.mrb[0].mxu0
  %v2336 = vadd.f32 %v286, %v2335
  %v2337 = vpop.f32.mrb[0].mxu0
  %v2338 = vpop.f32.mrb[0].mxu0
  %v2339 = vadd.f32 %v286, %v2338
  %v2340 = vpop.f32.mrb[0].mxu0
  %2341 = vmatprep.mubr.bf16.mxu0 0
  %2342 = vmatmul.mubr.bf16.gmra.mrb[0].mxu0 %v1311
  %v2343 = vpop.f32.mrb[0].mxu0
  %v2344 = vadd.f32 %v286, %v2343
  %v2345 = vpop.f32.mrb[0].mxu0
  %v2346 = vpop.f32.mrb[0].mxu0
  %v2347 = vadd.f32 %v286, %v2346
  %v2348 = vpop.f32.mrb[0].mxu0
  %2349 = vmatprep.mubr.bf16.mxu0 0
  %2350 = vmatmul.mubr.bf16.gmra.mrb[0].mxu0 %v1314
  %v2351 = vpop.f32.mrb[0].mxu0
  %v2352 = vadd.f32 %v286, %v2351
  %v2353 = vpop.f32.mrb[0].mxu0
  %v2354 = vpop.f32.mrb[0].mxu0
  %v2355 = vadd.f32 %v286, %v2354
  %v2356 = vpop.f32.mrb[0].mxu0
  %2357 = vmatprep.mubr.bf16.mxu0 0
  %2358 = vmatmul.mubr.bf16.gmra.mrb[0].mxu0 %v1317
  %v2359 = vpop.f32.mrb[0].mxu0
  %v2360 = vadd.f32 %v286, %v2359
  %v2361 = vpop.f32.mrb[0].mxu0
  %v2362 = vpop.f32.mrb[0].mxu0
  %v2363 = vadd.f32 %v286, %v2362
  %v2364 = vpop.f32.mrb[0].mxu0
  %2365 = vmatprep.mubr.bf16.mxu0 0
  %2366 = vmatmul.mubr.bf16.gmra.mrb[0].mxu0 %v1320
  %v2367 = vpop.f32.mrb[0].mxu0
  %v2368 = vadd.f32 %v286, %v2367
  %v2369 = vpop.f32.mrb[0].mxu0
  %v2370 = vpop.f32.mrb[0].mxu0
  %v2371 = vadd.f32 %v286, %v2370
  %v2372 = vpop.f32.mrb[0].mxu0
  %2373 = vmatprep.mubr.bf16.mxu0 0
  %2374 = vmatmul.mubr.bf16.gmra.mrb[0].mxu0 %v1323
  %v2375 = vpop.f32.mrb[0].mxu0
  %v2376 = vadd.f32 %v286, %v2375
  %v2377 = vpop.f32.mrb[0].mxu0
  %v2378 = vpop.f32.mrb[0].mxu0
  %v2379 = vadd.f32 %v286, %v2378
  %v2380 = vpop.f32.mrb[0].mxu0
  %2381 = vdwg.mxu0
  %v2382 = vmax.f32 %v1360, 0.0
  %v2383 = vmax.f32 %v1363, 0.0
  %v2384 = vmax.f32 %v1368, 0.0
  %v2385 = vmax.f32 %v1371, 0.0
  %v2386 = vmax.f32 %v1376, 0.0
  %v2387 = vmax.f32 %v1379, 0.0
  %v2388 = vmax.f32 %v1384, 0.0
  %v2389 = vmax.f32 %v1387, 0.0
  %v2390 = vmax.f32 %v1392, 0.0
  %v2391 = vmax.f32 %v1395, 0.0
  %v2392 = vmax.f32 %v1400, 0.0
  %v2393 = vmax.f32 %v1403, 0.0
  %v2394 = vmax.f32 %v1408, 0.0
  %v2395 = vmax.f32 %v1411, 0.0
  %v2396 = vmax.f32 %v1416, 0.0
  %v2397 = vmax.f32 %v1419, 0.0
  %v2398 = vmax.f32 %v1424, 0.0
  %v2399 = vmax.f32 %v1427, 0.0
  %v2400 = vmax.f32 %v1432, 0.0
  %v2401 = vmax.f32 %v1435, 0.0
  %v2402 = vmax.f32 %v1440, 0.0
  %v2403 = vmax.f32 %v1443, 0.0
  %v2404 = vmax.f32 %v1448, 0.0
  %v2405 = vmax.f32 %v1451, 0.0
  %v2406 = vmax.f32 %v1456, 0.0
  %v2407 = vmax.f32 %v1459, 0.0
  %v2408 = vmax.f32 %v1464, 0.0
  %v2409 = vmax.f32 %v1467, 0.0
  %v2410 = vmax.f32 %v1472, 0.0
  %v2411 = vmax.f32 %v1475, 0.0
  %v2412 = vmax.f32 %v1480, 0.0
  %v2413 = vmax.f32 %v1483, 0.0
  %v2414 = vmax.f32 %v1488, 0.0
  %v2415 = vmax.f32 %v1491, 0.0
  %v2416 = vmax.f32 %v1496, 0.0
  %v2417 = vmax.f32 %v1499, 0.0
  %v2418 = vmax.f32 %v1504, 0.0
  %v2419 = vmax.f32 %v1507, 0.0
  %v2420 = vmax.f32 %v1512, 0.0
  %v2421 = vmax.f32 %v1515, 0.0
  %v2422 = vmax.f32 %v1520, 0.0
  %v2423 = vmax.f32 %v1523, 0.0
  %v2424 = vmax.f32 %v1528, 0.0
  %v2425 = vmax.f32 %v1531, 0.0
  %v2426 = vmax.f32 %v1536, 0.0
  %v2427 = vmax.f32 %v1539, 0.0
  %v2428 = vmax.f32 %v1544, 0.0
  %v2429 = vmax.f32 %v1547, 0.0
  %v2430 = vmax.f32 %v1552, 0.0
  %v2431 = vmax.f32 %v1555, 0.0
  %v2432 = vmax.f32 %v1560, 0.0
  %v2433 = vmax.f32 %v1563, 0.0
  %v2434 = vmax.f32 %v1568, 0.0
  %v2435 = vmax.f32 %v1571, 0.0
  %v2436 = vmax.f32 %v1576, 0.0
  %v2437 = vmax.f32 %v1579, 0.0
  %v2438 = vmax.f32 %v1584, 0.0
  %v2439 = vmax.f32 %v1587, 0.0
  %v2440 = vmax.f32 %v1592, 0.0
  %v2441 = vmax.f32 %v1595, 0.0
  %v2442 = vmax.f32 %v1600, 0.0
  %v2443 = vmax.f32 %v1603, 0.0
  %v2444 = vmax.f32 %v1608, 0.0
  %v2445 = vmax.f32 %v1611, 0.0
  %v2446 = vmax.f32 %v1616, 0.0
  %v2447 = vmax.f32 %v1619, 0.0
  %v2448 = vmax.f32 %v1624, 0.0
  %v2449 = vmax.f32 %v1627, 0.0
  %v2450 = vmax.f32 %v1632, 0.0
  %v2451 = vmax.f32 %v1635, 0.0
  %v2452 = vmax.f32 %v1640, 0.0
  %v2453 = vmax.f32 %v1643, 0.0
  %v2454 = vmax.f32 %v1648, 0.0
  %v2455 = vmax.f32 %v1651, 0.0
  %v2456 = vmax.f32 %v1656, 0.0
  %v2457 = vmax.f32 %v1659, 0.0
  %v2458 = vmax.f32 %v1664, 0.0
  %v2459 = vmax.f32 %v1667, 0.0
  %v2460 = vmax.f32 %v1672, 0.0
  %v2461 = vmax.f32 %v1675, 0.0
  %v2462 = vmax.f32 %v1680, 0.0
  %v2463 = vmax.f32 %v1683, 0.0
  %v2464 = vmax.f32 %v1688, 0.0
  %v2465 = vmax.f32 %v1691, 0.0
  %v2466 = vmax.f32 %v1696, 0.0
  %v2467 = vmax.f32 %v1699, 0.0
  %v2468 = vmax.f32 %v1704, 0.0
  %v2469 = vmax.f32 %v1707, 0.0
  %v2470 = vmax.f32 %v1712, 0.0
  %v2471 = vmax.f32 %v1715, 0.0
  %v2472 = vmax.f32 %v1720, 0.0
  %v2473 = vmax.f32 %v1723, 0.0
  %v2474 = vmax.f32 %v1728, 0.0
  %v2475 = vmax.f32 %v1731, 0.0
  %v2476 = vmax.f32 %v1736, 0.0
  %v2477 = vmax.f32 %v1739, 0.0
  %v2478 = vmax.f32 %v1744, 0.0
  %v2479 = vmax.f32 %v1747, 0.0
  %v2480 = vmax.f32 %v1752, 0.0
  %v2481 = vmax.f32 %v1755, 0.0
  %v2482 = vmax.f32 %v1760, 0.0
  %v2483 = vmax.f32 %v1763, 0.0
  %v2484 = vmax.f32 %v1768, 0.0
  %v2485 = vmax.f32 %v1771, 0.0
  %v2486 = vmax.f32 %v1776, 0.0
  %v2487 = vmax.f32 %v1779, 0.0
  %v2488 = vmax.f32 %v1784, 0.0
  %v2489 = vmax.f32 %v1787, 0.0
  %v2490 = vmax.f32 %v1792, 0.0
  %v2491 = vmax.f32 %v1795, 0.0
  %v2492 = vmax.f32 %v1800, 0.0
  %v2493 = vmax.f32 %v1803, 0.0
  %v2494 = vmax.f32 %v1808, 0.0
  %v2495 = vmax.f32 %v1811, 0.0
  %v2496 = vmax.f32 %v1816, 0.0
  %v2497 = vmax.f32 %v1819, 0.0
  %v2498 = vmax.f32 %v1824, 0.0
  %v2499 = vmax.f32 %v1827, 0.0
  %v2500 = vmax.f32 %v1832, 0.0
  %v2501 = vmax.f32 %v1835, 0.0
  %v2502 = vmax.f32 %v1840, 0.0
  %v2503 = vmax.f32 %v1843, 0.0
  %v2504 = vmax.f32 %v1848, 0.0
  %v2505 = vmax.f32 %v1851, 0.0
  %v2506 = vmax.f32 %v1856, 0.0
  %v2507 = vmax.f32 %v1859, 0.0
  %v2508 = vmax.f32 %v1864, 0.0
  %v2509 = vmax.f32 %v1867, 0.0
  %v2510 = vmax.f32 %v1872, 0.0
  %v2511 = vmax.f32 %v1875, 0.0
  %v2512 = vmax.f32 %v1880, 0.0
  %v2513 = vmax.f32 %v1883, 0.0
  %v2514 = vmax.f32 %v1888, 0.0
  %v2515 = vmax.f32 %v1891, 0.0
  %v2516 = vmax.f32 %v1896, 0.0
  %v2517 = vmax.f32 %v1899, 0.0
  %v2518 = vmax.f32 %v1904, 0.0
  %v2519 = vmax.f32 %v1907, 0.0
  %v2520 = vmax.f32 %v1912, 0.0
  %v2521 = vmax.f32 %v1915, 0.0
  %v2522 = vmax.f32 %v1920, 0.0
  %v2523 = vmax.f32 %v1923, 0.0
  %v2524 = vmax.f32 %v1928, 0.0
  %v2525 = vmax.f32 %v1931, 0.0
  %v2526 = vmax.f32 %v1936, 0.0
  %v2527 = vmax.f32 %v1939, 0.0
  %v2528 = vmax.f32 %v1944, 0.0
  %v2529 = vmax.f32 %v1947, 0.0
  %v2530 = vmax.f32 %v1952, 0.0
  %v2531 = vmax.f32 %v1955, 0.0
  %v2532 = vmax.f32 %v1960, 0.0
  %v2533 = vmax.f32 %v1963, 0.0
  %v2534 = vmax.f32 %v1968, 0.0
  %v2535 = vmax.f32 %v1971, 0.0
  %v2536 = vmax.f32 %v1976, 0.0
  %v2537 = vmax.f32 %v1979, 0.0
  %v2538 = vmax.f32 %v1984, 0.0
  %v2539 = vmax.f32 %v1987, 0.0
  %v2540 = vmax.f32 %v1992, 0.0
  %v2541 = vmax.f32 %v1995, 0.0
  %v2542 = vmax.f32 %v2000, 0.0
  %v2543 = vmax.f32 %v2003, 0.0
  %v2544 = vmax.f32 %v2008, 0.0
  %v2545 = vmax.f32 %v2011, 0.0
  %v2546 = vmax.f32 %v2016, 0.0
  %v2547 = vmax.f32 %v2019, 0.0
  %v2548 = vmax.f32 %v2024, 0.0
  %v2549 = vmax.f32 %v2027, 0.0
  %v2550 = vmax.f32 %v2032, 0.0
  %v2551 = vmax.f32 %v2035, 0.0
  %v2552 = vmax.f32 %v2040, 0.0
  %v2553 = vmax.f32 %v2043, 0.0
  %v2554 = vmax.f32 %v2048, 0.0
  %v2555 = vmax.f32 %v2051, 0.0
  %v2556 = vmax.f32 %v2056, 0.0
  %v2557 = vmax.f32 %v2059, 0.0
  %v2558 = vmax.f32 %v2064, 0.0
  %v2559 = vmax.f32 %v2067, 0.0
  %v2560 = vmax.f32 %v2072, 0.0
  %v2561 = vmax.f32 %v2075, 0.0
  %v2562 = vmax.f32 %v2080, 0.0
  %v2563 = vmax.f32 %v2083, 0.0
  %v2564 = vmax.f32 %v2088, 0.0
  %v2565 = vmax.f32 %v2091, 0.0
  %v2566 = vmax.f32 %v2096, 0.0
  %v2567 = vmax.f32 %v2099, 0.0
  %v2568 = vmax.f32 %v2104, 0.0
  %v2569 = vmax.f32 %v2107, 0.0
  %v2570 = vmax.f32 %v2112, 0.0
  %v2571 = vmax.f32 %v2115, 0.0
  %v2572 = vmax.f32 %v2120, 0.0
  %v2573 = vmax.f32 %v2123, 0.0
  %v2574 = vmax.f32 %v2128, 0.0
  %v2575 = vmax.f32 %v2131, 0.0
  %v2576 = vmax.f32 %v2136, 0.0
  %v2577 = vmax.f32 %v2139, 0.0
  %v2578 = vmax.f32 %v2144, 0.0
  %v2579 = vmax.f32 %v2147, 0.0
  %v2580 = vmax.f32 %v2152, 0.0
  %v2581 = vmax.f32 %v2155, 0.0
  %v2582 = vmax.f32 %v2160, 0.0
  %v2583 = vmax.f32 %v2163, 0.0
  %v2584 = vmax.f32 %v2168, 0.0
  %v2585 = vmax.f32 %v2171, 0.0
  %v2586 = vmax.f32 %v2176, 0.0
  %v2587 = vmax.f32 %v2179, 0.0
  %v2588 = vmax.f32 %v2184, 0.0
  %v2589 = vmax.f32 %v2187, 0.0
  %v2590 = vmax.f32 %v2192, 0.0
  %v2591 = vmax.f32 %v2195, 0.0
  %v2592 = vmax.f32 %v2200, 0.0
  %v2593 = vmax.f32 %v2203, 0.0
  %v2594 = vmax.f32 %v2208, 0.0
  %v2595 = vmax.f32 %v2211, 0.0
  %v2596 = vmax.f32 %v2216, 0.0
  %v2597 = vmax.f32 %v2219, 0.0
  %v2598 = vmax.f32 %v2224, 0.0
  %v2599 = vmax.f32 %v2227, 0.0
  %v2600 = vmax.f32 %v2232, 0.0
  %v2601 = vmax.f32 %v2235, 0.0
  %v2602 = vmax.f32 %v2240, 0.0
  %v2603 = vmax.f32 %v2243, 0.0
  %v2604 = vmax.f32 %v2248, 0.0
  %v2605 = vmax.f32 %v2251, 0.0
  %v2606 = vmax.f32 %v2256, 0.0
  %v2607 = vmax.f32 %v2259, 0.0
  %v2608 = vmax.f32 %v2264, 0.0
  %v2609 = vmax.f32 %v2267, 0.0
  %v2610 = vmax.f32 %v2272, 0.0
  %v2611 = vmax.f32 %v2275, 0.0
  %v2612 = vmax.f32 %v2280, 0.0
  %v2613 = vmax.f32 %v2283, 0.0
  %v2614 = vmax.f32 %v2288, 0.0
  %v2615 = vmax.f32 %v2291, 0.0
  %v2616 = vmax.f32 %v2296, 0.0
  %v2617 = vmax.f32 %v2299, 0.0
  %v2618 = vmax.f32 %v2304, 0.0
  %v2619 = vmax.f32 %v2307, 0.0
  %v2620 = vmax.f32 %v2312, 0.0
  %v2621 = vmax.f32 %v2315, 0.0
  %v2622 = vmax.f32 %v2320, 0.0
  %v2623 = vmax.f32 %v2323, 0.0
  %v2624 = vmax.f32 %v2328, 0.0
  %v2625 = vmax.f32 %v2331, 0.0
  %v2626 = vmax.f32 %v2336, 0.0
  %v2627 = vmax.f32 %v2339, 0.0
  %v2628 = vmax.f32 %v2344, 0.0
  %v2629 = vmax.f32 %v2347, 0.0
  %v2630 = vmax.f32 %v2352, 0.0
  %v2631 = vmax.f32 %v2355, 0.0
  %v2632 = vmax.f32 %v2360, 0.0
  %v2633 = vmax.f32 %v2363, 0.0
  %v2634 = vmax.f32 %v2368, 0.0
  %v2635 = vmax.f32 %v2371, 0.0
  %v2636 = vmax.f32 %v2376, 0.0
  %v2637 = vmax.f32 %v2379, 0.0
  %v2638 = vsel %vm940, %v2382, 0.0
  %v2639 = vsel %vm940, %v2383, 0.0
  %v2640 = vadd.f32 %v2638, %v2639
  %v2641 = vsel %vm940, %v2384, 0.0
  %v2642 = vadd.f32 %v2640, %v2641
  %v2643 = vsel %vm940, %v2385, 0.0
  %v2644 = vadd.f32 %v2642, %v2643
  %v2645 = vsel %vm940, %v2386, 0.0
  %v2646 = vadd.f32 %v2644, %v2645
  %v2647 = vsel %vm940, %v2387, 0.0
  %v2648 = vadd.f32 %v2646, %v2647
  %v2649 = vsel %vm940, %v2388, 0.0
  %v2650 = vadd.f32 %v2648, %v2649
  %v2651 = vsel %vm940, %v2389, 0.0
  %v2652 = vadd.f32 %v2650, %v2651
  %v2653 = vsel %vm940, %v2390, 0.0
  %v2654 = vadd.f32 %v2652, %v2653
  %v2655 = vsel %vm940, %v2391, 0.0
  %v2656 = vadd.f32 %v2654, %v2655
  %v2657 = vsel %vm940, %v2392, 0.0
  %v2658 = vadd.f32 %v2656, %v2657
  %v2659 = vsel %vm940, %v2393, 0.0
  %v2660 = vadd.f32 %v2658, %v2659
  %v2661 = vsel %vm940, %v2394, 0.0
  %v2662 = vadd.f32 %v2660, %v2661
  %v2663 = vsel %vm940, %v2395, 0.0
  %v2664 = vadd.f32 %v2662, %v2663
  %v2665 = vsel %vm940, %v2396, 0.0
  %v2666 = vadd.f32 %v2664, %v2665
  %v2667 = vsel %vm940, %v2397, 0.0
  %v2668 = vadd.f32 %v2666, %v2667
  %v2669 = vsel %vm940, %v2398, 0.0
  %v2670 = vadd.f32 %v2668, %v2669
  %v2671 = vsel %vm940, %v2399, 0.0
  %v2672 = vadd.f32 %v2670, %v2671
  %v2673 = vsel %vm940, %v2400, 0.0
  %v2674 = vadd.f32 %v2672, %v2673
  %v2675 = vsel %vm940, %v2401, 0.0
  %v2676 = vadd.f32 %v2674, %v2675
  %v2677 = vsel %vm940, %v2402, 0.0
  %v2678 = vadd.f32 %v2676, %v2677
  %v2679 = vsel %vm940, %v2403, 0.0
  %v2680 = vadd.f32 %v2678, %v2679
  %v2681 = vsel %vm940, %v2404, 0.0
  %v2682 = vadd.f32 %v2680, %v2681
  %v2683 = vsel %vm940, %v2405, 0.0
  %v2684 = vadd.f32 %v2682, %v2683
  %v2685 = vsel %vm940, %v2406, 0.0
  %v2686 = vadd.f32 %v2684, %v2685
  %v2687 = vsel %vm940, %v2407, 0.0
  %v2688 = vadd.f32 %v2686, %v2687
  %v2689 = vsel %vm940, %v2408, 0.0
  %v2690 = vadd.f32 %v2688, %v2689
  %v2691 = vsel %vm940, %v2409, 0.0
  %v2692 = vadd.f32 %v2690, %v2691
  %v2693 = vsel %vm940, %v2410, 0.0
  %v2694 = vadd.f32 %v2692, %v2693
  %v2695 = vsel %vm940, %v2411, 0.0
  %v2696 = vadd.f32 %v2694, %v2695
  %v2697 = vsel %vm940, %v2412, 0.0
  %v2698 = vadd.f32 %v2696, %v2697
  %v2699 = vsel %vm940, %v2413, 0.0
  %v2700 = vadd.f32 %v2698, %v2699
  %v2701 = vrot.slane %v2700, 4
  %v2702 = vadd.f32 %v2700, %v2701
  %v2703 = vrot.slane %v2702, 2
  %v2704 = vadd.f32 %v2702, %v2703
  %v2705 = vrot.slane %v2704, 1
  %v2706 = vadd.f32 %v2704, %v2705
  %v2707 = vsel %vm940, %v2414, 0.0
  %v2708 = vsel %vm940, %v2415, 0.0
  %v2709 = vadd.f32 %v2707, %v2708
  %v2710 = vsel %vm940, %v2416, 0.0
  %v2711 = vadd.f32 %v2709, %v2710
  %v2712 = vsel %vm940, %v2417, 0.0
  %v2713 = vadd.f32 %v2711, %v2712
  %v2714 = vsel %vm940, %v2418, 0.0
  %v2715 = vadd.f32 %v2713, %v2714
  %v2716 = vsel %vm940, %v2419, 0.0
  %v2717 = vadd.f32 %v2715, %v2716
  %v2718 = vsel %vm940, %v2420, 0.0
  %v2719 = vadd.f32 %v2717, %v2718
  %v2720 = vsel %vm940, %v2421, 0.0
  %v2721 = vadd.f32 %v2719, %v2720
  %v2722 = vsel %vm940, %v2422, 0.0
  %v2723 = vadd.f32 %v2721, %v2722
  %v2724 = vsel %vm940, %v2423, 0.0
  %v2725 = vadd.f32 %v2723, %v2724
  %v2726 = vsel %vm940, %v2424, 0.0
  %v2727 = vadd.f32 %v2725, %v2726
  %v2728 = vsel %vm940, %v2425, 0.0
  %v2729 = vadd.f32 %v2727, %v2728
  %v2730 = vsel %vm940, %v2426, 0.0
  %v2731 = vadd.f32 %v2729, %v2730
  %v2732 = vsel %vm940, %v2427, 0.0
  %v2733 = vadd.f32 %v2731, %v2732
  %v2734 = vsel %vm940, %v2428, 0.0
  %v2735 = vadd.f32 %v2733, %v2734
  %v2736 = vsel %vm940, %v2429, 0.0
  %v2737 = vadd.f32 %v2735, %v2736
  %v2738 = vsel %vm940, %v2430, 0.0
  %v2739 = vadd.f32 %v2737, %v2738
  %v2740 = vsel %vm940, %v2431, 0.0
  %v2741 = vadd.f32 %v2739, %v2740
  %v2742 = vsel %vm940, %v2432, 0.0
  %v2743 = vadd.f32 %v2741, %v2742
  %v2744 = vsel %vm940, %v2433, 0.0
  %v2745 = vadd.f32 %v2743, %v2744
  %v2746 = vsel %vm940, %v2434, 0.0
  %v2747 = vadd.f32 %v2745, %v2746
  %v2748 = vsel %vm940, %v2435, 0.0
  %v2749 = vadd.f32 %v2747, %v2748
  %v2750 = vsel %vm940, %v2436, 0.0
  %v2751 = vadd.f32 %v2749, %v2750
  %v2752 = vsel %vm940, %v2437, 0.0
  %v2753 = vadd.f32 %v2751, %v2752
  %v2754 = vsel %vm940, %v2438, 0.0
  %v2755 = vadd.f32 %v2753, %v2754
  %v2756 = vsel %vm940, %v2439, 0.0
  %v2757 = vadd.f32 %v2755, %v2756
  %v2758 = vsel %vm940, %v2440, 0.0
  %v2759 = vadd.f32 %v2757, %v2758
  %v2760 = vsel %vm940, %v2441, 0.0
  %v2761 = vadd.f32 %v2759, %v2760
  %v2762 = vsel %vm940, %v2442, 0.0
  %v2763 = vadd.f32 %v2761, %v2762
  %v2764 = vsel %vm940, %v2443, 0.0
  %v2765 = vadd.f32 %v2763, %v2764
  %v2766 = vsel %vm940, %v2444, 0.0
  %v2767 = vadd.f32 %v2765, %v2766
  %v2768 = vsel %vm940, %v2445, 0.0
  %v2769 = vadd.f32 %v2767, %v2768
  %v2770 = vrot.slane %v2769, 4
  %v2771 = vadd.f32 %v2769, %v2770
  %v2772 = vrot.slane %v2771, 2
  %v2773 = vadd.f32 %v2771, %v2772
  %v2774 = vrot.slane %v2773, 1
  %v2775 = vadd.f32 %v2773, %v2774
  %v2776 = vsel %vm940, %v2446, 0.0
  %v2777 = vsel %vm940, %v2447, 0.0
  %v2778 = vadd.f32 %v2776, %v2777
  %v2779 = vsel %vm940, %v2448, 0.0
  %v2780 = vadd.f32 %v2778, %v2779
  %v2781 = vsel %vm940, %v2449, 0.0
  %v2782 = vadd.f32 %v2780, %v2781
  %v2783 = vsel %vm940, %v2450, 0.0
  %v2784 = vadd.f32 %v2782, %v2783
  %v2785 = vsel %vm940, %v2451, 0.0
  %v2786 = vadd.f32 %v2784, %v2785
  %v2787 = vsel %vm940, %v2452, 0.0
  %v2788 = vadd.f32 %v2786, %v2787
  %v2789 = vsel %vm940, %v2453, 0.0
  %v2790 = vadd.f32 %v2788, %v2789
  %v2791 = vsel %vm940, %v2454, 0.0
  %v2792 = vadd.f32 %v2790, %v2791
  %v2793 = vsel %vm940, %v2455, 0.0
  %v2794 = vadd.f32 %v2792, %v2793
  %v2795 = vsel %vm940, %v2456, 0.0
  %v2796 = vadd.f32 %v2794, %v2795
  %v2797 = vsel %vm940, %v2457, 0.0
  %v2798 = vadd.f32 %v2796, %v2797
  %v2799 = vsel %vm940, %v2458, 0.0
  %v2800 = vadd.f32 %v2798, %v2799
  %v2801 = vsel %vm940, %v2459, 0.0
  %v2802 = vadd.f32 %v2800, %v2801
  %v2803 = vsel %vm940, %v2460, 0.0
  %v2804 = vadd.f32 %v2802, %v2803
  %v2805 = vsel %vm940, %v2461, 0.0
  %v2806 = vadd.f32 %v2804, %v2805
  %v2807 = vsel %vm940, %v2462, 0.0
  %v2808 = vadd.f32 %v2806, %v2807
  %v2809 = vsel %vm940, %v2463, 0.0
  %v2810 = vadd.f32 %v2808, %v2809
  %v2811 = vsel %vm940, %v2464, 0.0
  %v2812 = vadd.f32 %v2810, %v2811
  %v2813 = vsel %vm940, %v2465, 0.0
  %v2814 = vadd.f32 %v2812, %v2813
  %v2815 = vsel %vm940, %v2466, 0.0
  %v2816 = vadd.f32 %v2814, %v2815
  %v2817 = vsel %vm940, %v2467, 0.0
  %v2818 = vadd.f32 %v2816, %v2817
  %v2819 = vsel %vm940, %v2468, 0.0
  %v2820 = vadd.f32 %v2818, %v2819
  %v2821 = vsel %vm940, %v2469, 0.0
  %v2822 = vadd.f32 %v2820, %v2821
  %v2823 = vsel %vm940, %v2470, 0.0
  %v2824 = vadd.f32 %v2822, %v2823
  %v2825 = vsel %vm940, %v2471, 0.0
  %v2826 = vadd.f32 %v2824, %v2825
  %v2827 = vsel %vm940, %v2472, 0.0
  %v2828 = vadd.f32 %v2826, %v2827
  %v2829 = vsel %vm940, %v2473, 0.0
  %v2830 = vadd.f32 %v2828, %v2829
  %v2831 = vsel %vm940, %v2474, 0.0
  %v2832 = vadd.f32 %v2830, %v2831
  %v2833 = vsel %vm940, %v2475, 0.0
  %v2834 = vadd.f32 %v2832, %v2833
  %v2835 = vsel %vm940, %v2476, 0.0
  %v2836 = vadd.f32 %v2834, %v2835
  %v2837 = vsel %vm940, %v2477, 0.0
  %v2838 = vadd.f32 %v2836, %v2837
  %v2839 = vrot.slane %v2838, 4
  %v2840 = vadd.f32 %v2838, %v2839
  %v2841 = vrot.slane %v2840, 2
  %v2842 = vadd.f32 %v2840, %v2841
  %v2843 = vrot.slane %v2842, 1
  %v2844 = vadd.f32 %v2842, %v2843
  %v2845 = vsel %vm940, %v2478, 0.0
  %v2846 = vsel %vm940, %v2479, 0.0
  %v2847 = vadd.f32 %v2845, %v2846
  %v2848 = vsel %vm940, %v2480, 0.0
  %v2849 = vadd.f32 %v2847, %v2848
  %v2850 = vsel %vm940, %v2481, 0.0
  %v2851 = vadd.f32 %v2849, %v2850
  %v2852 = vsel %vm940, %v2482, 0.0
  %v2853 = vadd.f32 %v2851, %v2852
  %v2854 = vsel %vm940, %v2483, 0.0
  %v2855 = vadd.f32 %v2853, %v2854
  %v2856 = vsel %vm940, %v2484, 0.0
  %v2857 = vadd.f32 %v2855, %v2856
  %v2858 = vsel %vm940, %v2485, 0.0
  %v2859 = vadd.f32 %v2857, %v2858
  %v2860 = vsel %vm940, %v2486, 0.0
  %v2861 = vadd.f32 %v2859, %v2860
  %v2862 = vsel %vm940, %v2487, 0.0
  %v2863 = vadd.f32 %v2861, %v2862
  %v2864 = vsel %vm940, %v2488, 0.0
  %v2865 = vadd.f32 %v2863, %v2864
  %v2866 = vsel %vm940, %v2489, 0.0
  %v2867 = vadd.f32 %v2865, %v2866
  %v2868 = vsel %vm940, %v2490, 0.0
  %v2869 = vadd.f32 %v2867, %v2868
  %v2870 = vsel %vm940, %v2491, 0.0
  %v2871 = vadd.f32 %v2869, %v2870
  %v2872 = vsel %vm940, %v2492, 0.0
  %v2873 = vadd.f32 %v2871, %v2872
  %v2874 = vsel %vm940, %v2493, 0.0
  %v2875 = vadd.f32 %v2873, %v2874
  %v2876 = vsel %vm940, %v2494, 0.0
  %v2877 = vadd.f32 %v2875, %v2876
  %v2878 = vsel %vm940, %v2495, 0.0
  %v2879 = vadd.f32 %v2877, %v2878
  %v2880 = vsel %vm940, %v2496, 0.0
  %v2881 = vadd.f32 %v2879, %v2880
  %v2882 = vsel %vm940, %v2497, 0.0
  %v2883 = vadd.f32 %v2881, %v2882
  %v2884 = vsel %vm940, %v2498, 0.0
  %v2885 = vadd.f32 %v2883, %v2884
  %v2886 = vsel %vm940, %v2499, 0.0
  %v2887 = vadd.f32 %v2885, %v2886
  %v2888 = vsel %vm940, %v2500, 0.0
  %v2889 = vadd.f32 %v2887, %v2888
  %v2890 = vsel %vm940, %v2501, 0.0
  %v2891 = vadd.f32 %v2889, %v2890
  %v2892 = vsel %vm940, %v2502, 0.0
  %v2893 = vadd.f32 %v2891, %v2892
  %v2894 = vsel %vm940, %v2503, 0.0
  %v2895 = vadd.f32 %v2893, %v2894
  %v2896 = vsel %vm940, %v2504, 0.0
  %v2897 = vadd.f32 %v2895, %v2896
  %v2898 = vsel %vm940, %v2505, 0.0
  %v2899 = vadd.f32 %v2897, %v2898
  %v2900 = vsel %vm940, %v2506, 0.0
  %v2901 = vadd.f32 %v2899, %v2900
  %v2902 = vsel %vm940, %v2507, 0.0
  %v2903 = vadd.f32 %v2901, %v2902
  %v2904 = vsel %vm940, %v2508, 0.0
  %v2905 = vadd.f32 %v2903, %v2904
  %v2906 = vsel %vm940, %v2509, 0.0
  %v2907 = vadd.f32 %v2905, %v2906
  %v2908 = vrot.slane %v2907, 4
  %v2909 = vadd.f32 %v2907, %v2908
  %v2910 = vrot.slane %v2909, 2
  %v2911 = vadd.f32 %v2909, %v2910
  %v2912 = vrot.slane %v2911, 1
  %v2913 = vadd.f32 %v2911, %v2912
  %v2914 = vsel %vm940, %v2510, 0.0
  %v2915 = vsel %vm940, %v2511, 0.0
  %v2916 = vadd.f32 %v2914, %v2915
  %v2917 = vsel %vm940, %v2512, 0.0
  %v2918 = vadd.f32 %v2916, %v2917
  %v2919 = vsel %vm940, %v2513, 0.0
  %v2920 = vadd.f32 %v2918, %v2919
  %v2921 = vsel %vm940, %v2514, 0.0
  %v2922 = vadd.f32 %v2920, %v2921
  %v2923 = vsel %vm940, %v2515, 0.0
  %v2924 = vadd.f32 %v2922, %v2923
  %v2925 = vsel %vm940, %v2516, 0.0
  %v2926 = vadd.f32 %v2924, %v2925
  %v2927 = vsel %vm940, %v2517, 0.0
  %v2928 = vadd.f32 %v2926, %v2927
  %v2929 = vsel %vm940, %v2518, 0.0
  %v2930 = vadd.f32 %v2928, %v2929
  %v2931 = vsel %vm940, %v2519, 0.0
  %v2932 = vadd.f32 %v2930, %v2931
  %v2933 = vsel %vm940, %v2520, 0.0
  %v2934 = vadd.f32 %v2932, %v2933
  %v2935 = vsel %vm940, %v2521, 0.0
  %v2936 = vadd.f32 %v2934, %v2935
  %v2937 = vsel %vm940, %v2522, 0.0
  %v2938 = vadd.f32 %v2936, %v2937
  %v2939 = vsel %vm940, %v2523, 0.0
  %v2940 = vadd.f32 %v2938, %v2939
  %v2941 = vsel %vm940, %v2524, 0.0
  %v2942 = vadd.f32 %v2940, %v2941
  %v2943 = vsel %vm940, %v2525, 0.0
  %v2944 = vadd.f32 %v2942, %v2943
  %v2945 = vsel %vm940, %v2526, 0.0
  %v2946 = vadd.f32 %v2944, %v2945
  %v2947 = vsel %vm940, %v2527, 0.0
  %v2948 = vadd.f32 %v2946, %v2947
  %v2949 = vsel %vm940, %v2528, 0.0
  %v2950 = vadd.f32 %v2948, %v2949
  %v2951 = vsel %vm940, %v2529, 0.0
  %v2952 = vadd.f32 %v2950, %v2951
  %v2953 = vsel %vm940, %v2530, 0.0
  %v2954 = vadd.f32 %v2952, %v2953
  %v2955 = vsel %vm940, %v2531, 0.0
  %v2956 = vadd.f32 %v2954, %v2955
  %v2957 = vsel %vm940, %v2532, 0.0
  %v2958 = vadd.f32 %v2956, %v2957
  %v2959 = vsel %vm940, %v2533, 0.0
  %v2960 = vadd.f32 %v2958, %v2959
  %v2961 = vsel %vm940, %v2534, 0.0
  %v2962 = vadd.f32 %v2960, %v2961
  %v2963 = vsel %vm940, %v2535, 0.0
  %v2964 = vadd.f32 %v2962, %v2963
  %v2965 = vsel %vm940, %v2536, 0.0
  %v2966 = vadd.f32 %v2964, %v2965
  %v2967 = vsel %vm940, %v2537, 0.0
  %v2968 = vadd.f32 %v2966, %v2967
  %v2969 = vsel %vm940, %v2538, 0.0
  %v2970 = vadd.f32 %v2968, %v2969
  %v2971 = vsel %vm940, %v2539, 0.0
  %v2972 = vadd.f32 %v2970, %v2971
  %v2973 = vsel %vm940, %v2540, 0.0
  %v2974 = vadd.f32 %v2972, %v2973
  %v2975 = vsel %vm940, %v2541, 0.0
  %v2976 = vadd.f32 %v2974, %v2975
  %v2977 = vrot.slane %v2976, 4
  %v2978 = vadd.f32 %v2976, %v2977
  %v2979 = vrot.slane %v2978, 2
  %v2980 = vadd.f32 %v2978, %v2979
  %v2981 = vrot.slane %v2980, 1
  %v2982 = vadd.f32 %v2980, %v2981
  %v2983 = vsel %vm940, %v2542, 0.0
  %v2984 = vsel %vm940, %v2543, 0.0
  %v2985 = vadd.f32 %v2983, %v2984
  %v2986 = vsel %vm940, %v2544, 0.0
  %v2987 = vadd.f32 %v2985, %v2986
  %v2988 = vsel %vm940, %v2545, 0.0
  %v2989 = vadd.f32 %v2987, %v2988
  %v2990 = vsel %vm940, %v2546, 0.0
  %v2991 = vadd.f32 %v2989, %v2990
  %v2992 = vsel %vm940, %v2547, 0.0
  %v2993 = vadd.f32 %v2991, %v2992
  %v2994 = vsel %vm940, %v2548, 0.0
  %v2995 = vadd.f32 %v2993, %v2994
  %v2996 = vsel %vm940, %v2549, 0.0
  %v2997 = vadd.f32 %v2995, %v2996
  %v2998 = vsel %vm940, %v2550, 0.0
  %v2999 = vadd.f32 %v2997, %v2998
  %v3000 = vsel %vm940, %v2551, 0.0
  %v3001 = vadd.f32 %v2999, %v3000
  %v3002 = vsel %vm940, %v2552, 0.0
  %v3003 = vadd.f32 %v3001, %v3002
  %v3004 = vsel %vm940, %v2553, 0.0
  %v3005 = vadd.f32 %v3003, %v3004
  %v3006 = vsel %vm940, %v2554, 0.0
  %v3007 = vadd.f32 %v3005, %v3006
  %v3008 = vsel %vm940, %v2555, 0.0
  %v3009 = vadd.f32 %v3007, %v3008
  %v3010 = vsel %vm940, %v2556, 0.0
  %v3011 = vadd.f32 %v3009, %v3010
  %v3012 = vsel %vm940, %v2557, 0.0
  %v3013 = vadd.f32 %v3011, %v3012
  %v3014 = vsel %vm940, %v2558, 0.0
  %v3015 = vadd.f32 %v3013, %v3014
  %v3016 = vsel %vm940, %v2559, 0.0
  %v3017 = vadd.f32 %v3015, %v3016
  %v3018 = vsel %vm940, %v2560, 0.0
  %v3019 = vadd.f32 %v3017, %v3018
  %v3020 = vsel %vm940, %v2561, 0.0
  %v3021 = vadd.f32 %v3019, %v3020
  %v3022 = vsel %vm940, %v2562, 0.0
  %v3023 = vadd.f32 %v3021, %v3022
  %v3024 = vsel %vm940, %v2563, 0.0
  %v3025 = vadd.f32 %v3023, %v3024
  %v3026 = vsel %vm940, %v2564, 0.0
  %v3027 = vadd.f32 %v3025, %v3026
  %v3028 = vsel %vm940, %v2565, 0.0
  %v3029 = vadd.f32 %v3027, %v3028
  %v3030 = vsel %vm940, %v2566, 0.0
  %v3031 = vadd.f32 %v3029, %v3030
  %v3032 = vsel %vm940, %v2567, 0.0
  %v3033 = vadd.f32 %v3031, %v3032
  %v3034 = vsel %vm940, %v2568, 0.0
  %v3035 = vadd.f32 %v3033, %v3034
  %v3036 = vsel %vm940, %v2569, 0.0
  %v3037 = vadd.f32 %v3035, %v3036
  %v3038 = vsel %vm940, %v2570, 0.0
  %v3039 = vadd.f32 %v3037, %v3038
  %v3040 = vsel %vm940, %v2571, 0.0
  %v3041 = vadd.f32 %v3039, %v3040
  %v3042 = vsel %vm940, %v2572, 0.0
  %v3043 = vadd.f32 %v3041, %v3042
  %v3044 = vsel %vm940, %v2573, 0.0
  %v3045 = vadd.f32 %v3043, %v3044
  %v3046 = vrot.slane %v3045, 4
  %v3047 = vadd.f32 %v3045, %v3046
  %v3048 = vrot.slane %v3047, 2
  %v3049 = vadd.f32 %v3047, %v3048
  %v3050 = vrot.slane %v3049, 1
  %v3051 = vadd.f32 %v3049, %v3050
  %v3052 = vsel %vm940, %v2574, 0.0
  %v3053 = vsel %vm940, %v2575, 0.0
  %v3054 = vadd.f32 %v3052, %v3053
  %v3055 = vsel %vm940, %v2576, 0.0
  %v3056 = vadd.f32 %v3054, %v3055
  %v3057 = vsel %vm940, %v2577, 0.0
  %v3058 = vadd.f32 %v3056, %v3057
  %v3059 = vsel %vm940, %v2578, 0.0
  %v3060 = vadd.f32 %v3058, %v3059
  %v3061 = vsel %vm940, %v2579, 0.0
  %v3062 = vadd.f32 %v3060, %v3061
  %v3063 = vsel %vm940, %v2580, 0.0
  %v3064 = vadd.f32 %v3062, %v3063
  %v3065 = vsel %vm940, %v2581, 0.0
  %v3066 = vadd.f32 %v3064, %v3065
  %v3067 = vsel %vm940, %v2582, 0.0
  %v3068 = vadd.f32 %v3066, %v3067
  %v3069 = vsel %vm940, %v2583, 0.0
  %v3070 = vadd.f32 %v3068, %v3069
  %v3071 = vsel %vm940, %v2584, 0.0
  %v3072 = vadd.f32 %v3070, %v3071
  %v3073 = vsel %vm940, %v2585, 0.0
  %v3074 = vadd.f32 %v3072, %v3073
  %v3075 = vsel %vm940, %v2586, 0.0
  %v3076 = vadd.f32 %v3074, %v3075
  %v3077 = vsel %vm940, %v2587, 0.0
  %v3078 = vadd.f32 %v3076, %v3077
  %v3079 = vsel %vm940, %v2588, 0.0
  %v3080 = vadd.f32 %v3078, %v3079
  %v3081 = vsel %vm940, %v2589, 0.0
  %v3082 = vadd.f32 %v3080, %v3081
  %v3083 = vsel %vm940, %v2590, 0.0
  %v3084 = vadd.f32 %v3082, %v3083
  %v3085 = vsel %vm940, %v2591, 0.0
  %v3086 = vadd.f32 %v3084, %v3085
  %v3087 = vsel %vm940, %v2592, 0.0
  %v3088 = vadd.f32 %v3086, %v3087
  %v3089 = vsel %vm940, %v2593, 0.0
  %v3090 = vadd.f32 %v3088, %v3089
  %v3091 = vsel %vm940, %v2594, 0.0
  %v3092 = vadd.f32 %v3090, %v3091
  %v3093 = vsel %vm940, %v2595, 0.0
  %v3094 = vadd.f32 %v3092, %v3093
  %v3095 = vsel %vm940, %v2596, 0.0
  %v3096 = vadd.f32 %v3094, %v3095
  %v3097 = vsel %vm940, %v2597, 0.0
  %v3098 = vadd.f32 %v3096, %v3097
  %v3099 = vsel %vm940, %v2598, 0.0
  %v3100 = vadd.f32 %v3098, %v3099
  %v3101 = vsel %vm940, %v2599, 0.0
  %v3102 = vadd.f32 %v3100, %v3101
  %v3103 = vsel %vm940, %v2600, 0.0
  %v3104 = vadd.f32 %v3102, %v3103
  %v3105 = vsel %vm940, %v2601, 0.0
  %v3106 = vadd.f32 %v3104, %v3105
  %v3107 = vsel %vm940, %v2602, 0.0
  %v3108 = vadd.f32 %v3106, %v3107
  %v3109 = vsel %vm940, %v2603, 0.0
  %v3110 = vadd.f32 %v3108, %v3109
  %v3111 = vsel %vm940, %v2604, 0.0
  %v3112 = vadd.f32 %v3110, %v3111
  %v3113 = vsel %vm940, %v2605, 0.0
  %v3114 = vadd.f32 %v3112, %v3113
  %v3115 = vrot.slane %v3114, 4
  %v3116 = vadd.f32 %v3114, %v3115
  %v3117 = vrot.slane %v3116, 2
  %v3118 = vadd.f32 %v3116, %v3117
  %v3119 = vrot.slane %v3118, 1
  %v3120 = vadd.f32 %v3118, %v3119
  %v3121 = vsel %vm940, %v2606, 0.0
  %v3122 = vsel %vm940, %v2607, 0.0
  %v3123 = vadd.f32 %v3121, %v3122
  %v3124 = vsel %vm940, %v2608, 0.0
  %v3125 = vadd.f32 %v3123, %v3124
  %v3126 = vsel %vm940, %v2609, 0.0
  %v3127 = vadd.f32 %v3125, %v3126
  %v3128 = vsel %vm940, %v2610, 0.0
  %v3129 = vadd.f32 %v3127, %v3128
  %v3130 = vsel %vm940, %v2611, 0.0
  %v3131 = vadd.f32 %v3129, %v3130
  %v3132 = vsel %vm940, %v2612, 0.0
  %v3133 = vadd.f32 %v3131, %v3132
  %v3134 = vsel %vm940, %v2613, 0.0
  %v3135 = vadd.f32 %v3133, %v3134
  %v3136 = vsel %vm940, %v2614, 0.0
  %v3137 = vadd.f32 %v3135, %v3136
  %v3138 = vsel %vm940, %v2615, 0.0
  %v3139 = vadd.f32 %v3137, %v3138
  %v3140 = vsel %vm940, %v2616, 0.0
  %v3141 = vadd.f32 %v3139, %v3140
  %v3142 = vsel %vm940, %v2617, 0.0
  %v3143 = vadd.f32 %v3141, %v3142
  %v3144 = vsel %vm940, %v2618, 0.0
  %v3145 = vadd.f32 %v3143, %v3144
  %v3146 = vsel %vm940, %v2619, 0.0
  %v3147 = vadd.f32 %v3145, %v3146
  %v3148 = vsel %vm940, %v2620, 0.0
  %v3149 = vadd.f32 %v3147, %v3148
  %v3150 = vsel %vm940, %v2621, 0.0
  %v3151 = vadd.f32 %v3149, %v3150
  %v3152 = vsel %vm940, %v2622, 0.0
  %v3153 = vadd.f32 %v3151, %v3152
  %v3154 = vsel %vm940, %v2623, 0.0
  %v3155 = vadd.f32 %v3153, %v3154
  %v3156 = vsel %vm940, %v2624, 0.0
  %v3157 = vadd.f32 %v3155, %v3156
  %v3158 = vsel %vm940, %v2625, 0.0
  %v3159 = vadd.f32 %v3157, %v3158
  %v3160 = vsel %vm940, %v2626, 0.0
  %v3161 = vadd.f32 %v3159, %v3160
  %v3162 = vsel %vm940, %v2627, 0.0
  %v3163 = vadd.f32 %v3161, %v3162
  %v3164 = vsel %vm940, %v2628, 0.0
  %v3165 = vadd.f32 %v3163, %v3164
  %v3166 = vsel %vm940, %v2629, 0.0
  %v3167 = vadd.f32 %v3165, %v3166
  %v3168 = vsel %vm940, %v2630, 0.0
  %v3169 = vadd.f32 %v3167, %v3168
  %v3170 = vsel %vm940, %v2631, 0.0
  %v3171 = vadd.f32 %v3169, %v3170
  %v3172 = vsel %vm940, %v2632, 0.0
  %v3173 = vadd.f32 %v3171, %v3172
  %v3174 = vsel %vm940, %v2633, 0.0
  %v3175 = vadd.f32 %v3173, %v3174
  %v3176 = vsel %vm940, %v2634, 0.0
  %v3177 = vadd.f32 %v3175, %v3176
  %v3178 = vsel %vm940, %v2635, 0.0
  %v3179 = vadd.f32 %v3177, %v3178
  %v3180 = vsel %vm940, %v2636, 0.0
  %v3181 = vadd.f32 %v3179, %v3180
  %v3182 = vsel %vm940, %v2637, 0.0
  %v3183 = vadd.f32 %v3181, %v3182
  %v3184 = vrot.slane %v3183, 4
  %v3185 = vadd.f32 %v3183, %v3184
  %v3186 = vrot.slane %v3185, 2
  %v3187 = vadd.f32 %v3185, %v3186
  %v3188 = vrot.slane %v3187, 1
  %v3189 = vadd.f32 %v3187, %v3188
  %v3190 = vmul.f32 %v2706, 0.00390625
  %v3191 = vmul.f32 %v2775, 0.00390625
  %v3192 = vmul.f32 %v2844, 0.00390625
  %v3193 = vmul.f32 %v2913, 0.00390625
  %v3194 = vmul.f32 %v2982, 0.00390625
  %v3195 = vmul.f32 %v3051, 0.00390625
  %v3196 = vmul.f32 %v3120, 0.00390625
  %v3197 = vmul.f32 %v3189, 0.00390625
  %v3198 = vld [vmem:[%s3] sm:$0xff]
  %v3199 = vld [vmem:[%s3 + $0x8] sm:$0xff]
  %v3200 = vld [vmem:[%s3 + $0x10] sm:$0xff]
  %v3201 = vld [vmem:[%s3 + $0x18] sm:$0xff]
  %v3202 = vld [vmem:[%s4] sm:$0x1]
  %v3204 = vlaneseq
  %v3205 = vshrl.u32 %v3204, 7
  %v3206 = vsub.s32 0, %v3205
  %v3207 = vrot.slane %v3202, %v3206
  %vm3217 = vcmask 1041409
  %v3218 = vsel %vm3217, %v3191, %v3190
  %vm3219 = vcmask 1042434
  %v3220 = vsel %vm3219, %v3192, %v3218
  %vm3221 = vcmask 1043459
  %v3222 = vsel %vm3221, %v3193, %v3220
  %vm3223 = vcmask 1044484
  %v3224 = vsel %vm3223, %v3194, %v3222
  %vm3225 = vcmask 1045509
  %v3226 = vsel %vm3225, %v3195, %v3224
  %vm3227 = vcmask 1046534
  %v3228 = vsel %vm3227, %v3196, %v3226
  %vm3229 = vcmask 1047559
  %v3230 = vsel %vm3229, %v3197, %v3228
  %v3231 = vsel %vm940, %v3230, 0
  %3233 = vmatprep.subr.mxu0 0.0
  %3234 = vmatpush1.msra.mxu0 %v3198
  %3235 = vmatprep.subr.mxu0 0.0
  %3236 = vmatpush1.msra.mxu0 %v3199
  %3237 = vmatprep.subr.mxu0 0.0
  %3238 = vmatpush1.msra.mxu0 %v3200
  %3239 = vmatprep.subr.mxu0 0.0
  %3240 = vmatpush1.msra.mxu0 %v3201
  %3241 = vmatprep.subr.mxu0 0.0
  %3242 = vmatpush1.msra.mxu0 0.0
  %3243 = vmatprep.subr.mxu0 0.0
  %3244 = vmatpush1.msra.mxu0 0.0
  %3245 = vmatprep.subr.mxu0 0.0
  %3246 = vmatpush1.msra.mxu0 0.0
  %3247 = vmatprep.subr.mxu0 0.0
  %3248 = vmatpush1.msra.mxu0 0.0
  %3249 = vmatprep.subr.mxu0 0.0
  %3250 = vmatpush1.msra.mxu0 0.0
  %3251 = vmatprep.subr.mxu0 0.0
  %3252 = vmatpush1.msra.mxu0 0.0
  %3253 = vmatprep.subr.mxu0 0.0
  %3254 = vmatpush1.msra.mxu0 0.0
  %3255 = vmatprep.subr.mxu0 0.0
  %3256 = vmatpush1.msra.mxu0 0.0
  %3257 = vmatprep.subr.mxu0 0.0
  %3258 = vmatpush1.msra.mxu0 0.0
  %3259 = vmatprep.subr.mxu0 0.0
  %3260 = vmatpush1.msra.mxu0 0.0
  %3261 = vmatprep.subr.mxu0 0.0
  %3262 = vmatpush1.msra.mxu0 0.0
  %3263 = vmatprep.subr.mxu0 0.0
  %3264 = vmatpush1.msra.mxu0 0.0
  %3265 = vmatprep.subr.mxu0 0.0
  %3266 = vmatpush1.msra.mxu0 0.0
  %3267 = vmatprep.subr.mxu0 0.0
  %3268 = vmatpush1.msra.mxu0 0.0
  %3269 = vmatprep.subr.mxu0 0.0
  %3270 = vmatpush1.msra.mxu0 0.0
  %3271 = vmatprep.subr.mxu0 0.0
  %3272 = vmatpush1.msra.mxu0 0.0
  %3273 = vmatprep.subr.mxu0 0.0
  %3274 = vmatpush1.msra.mxu0 0.0
  %3275 = vmatprep.subr.mxu0 0.0
  %3276 = vmatpush1.msra.mxu0 0.0
  %3277 = vmatprep.subr.mxu0 0.0
  %3278 = vmatpush1.msra.mxu0 0.0
  %3279 = vmatprep.subr.mxu0 0.0
  %3280 = vmatpush1.msra.mxu0 0.0
  %3281 = vmatprep.subr.mxu0 0.0
  %3282 = vmatpush1.msra.mxu0 0.0
  %3283 = vmatprep.subr.mxu0 0.0
  %3284 = vmatpush1.msra.mxu0 0.0
  %3285 = vmatprep.subr.mxu0 0.0
  %3286 = vmatpush1.msra.mxu0 0.0
  %3287 = vmatprep.subr.mxu0 0.0
  %3288 = vmatpush1.msra.mxu0 0.0
  %3289 = vmatprep.subr.mxu0 0.0
  %3290 = vmatpush1.msra.mxu0 0.0
  %3291 = vmatprep.subr.mxu0 0.0
  %3292 = vmatpush1.msra.mxu0 0.0
  %3293 = vmatprep.subr.mxu0 0.0
  %3294 = vmatpush1.msra.mxu0 0.0
  %3295 = vmatprep.subr.mxu0 0.0
  %3296 = vmatpush1.msra.mxu0 0.0
  %3297 = vmatprep.mubr.f32.mxu0 0.0
  %3298 = vmatmul.mubr.f32.gmra.mrb[0].mxu0 %v3231
  %v3299 = vpop.f32.mrb[0].mxu0
  %v3300 = vadd.f32 %v3207, %v3299
  %v3301 = vpop.f32.mrb[0].mxu0
  %3302 = vdwg.mxu0
  %3303 = vst [vmem:[%s5] sm:$0xff] %v3300
  // Predicated region
  $region22: #{class_forward.1} parent=0 // pred_check
    _
  $region23: #{class_forward.1} parent=0 // pred_check_branch
    %3305 = sbr.rel (0) target = $region25
  $region24: #{class_forward.1} parent=0 // pred_region
    _
  $region25: #{class_forward.1} parent=0 // pred_fallthru
    _
  // Predicated region
  $region26: #{class_forward.1} parent=0 // pred_check
    _
  $region27: #{class_forward.1} parent=0 // pred_check_branch
    %3307 = sbr.rel (0) target = $region29
  $region28: #{class_forward.1} parent=0 // pred_region
    _
  $region29: #{class_forward.1} parent=0 // pred_fallthru
    _

</llo_original>
